<compile_context>
chip_gen: v7x
topology: tpu7x:2x2x1
jax: 0.10.0
libtpu: 0.0.40
codegen_flags: <defaults>
</compile_context>

<pallas_src>
import math

import jax
import jax.numpy as jnp
import numpy as np
from jax import lax
from jax.experimental import pallas as pl
from jax.experimental.pallas import tpu as pltpu


# Fixed architecture hyper-parameters (PyTorch module defaults).
C_KERNELS = (7, 5)            # conv kernel sizes
IN_CH = (3, 6)
OUT_CH = (6, 16)
CONV_PAD = 2
POOL_K, POOL_S, POOL_PAD = 2, 2, 1
FC1_OUT = 64


def _pick_batch_tile(batch):
    if batch <= 8:
        return batch
    return 8 if batch % 8 == 0 else batch


def make_forward(input_size, output_size, batch):
    """Builds (prepare_params, forward) closures for the given static sizes."""
    k1, k2 = C_KERNELS
    ch0, ch1 = IN_CH                                  # 3, 6
    _, ch2 = OUT_CH                                   # 16
    pad = CONV_PAD

    h1 = input_size + 2 * pad - (k1 - 1)              # conv1 spatial (14)
    hp = (h1 + 2 * POOL_PAD - POOL_K) // POOL_S + 1   # pooled spatial (8)
    h2 = hp + 2 * pad - (k2 - 1)                      # conv2 spatial (8)
    assert h1 % 2 == 0 and hp == h1 // 2 + 1, "pool layout assumes even conv1 size"

    hin_p = input_size + 2 * pad                      # padded conv1 input rows (20)
    hpl_p = hp + 2 * pad                              # padded conv2 input rows (12)

    lane_in1 = hin_p * ch0                            # 60  lanes: (padded w, cin)
    lane_c1 = (h1 + 2) * ch1                          # 96  conv1 out (+1 zero col each side)
    lane_pool = (h1 + 1) * ch1                        # 90  W-max candidate columns
    lane_c2 = h2 * ch2                                # 128 conv2 out (w', cout), lane-dense
    fc1_in = h2 * lane_c2                             # 1024
    in_w_lanes = input_size * ch0                     # 48

    bt = _pick_batch_tile(batch)                      # per-grid-step batch tile
    assert batch % bt == 0
    n_steps = batch // bt

    m1 = bt * hin_p - (k1 - 1)                        # conv1 tall output rows
    m2 = bt * hpl_p - (k2 - 1)                        # conv2 tall output rows

    # ------------------------------ kernel ---------------------------------
    def kernel(x_ref, B1_ref, b1_ref, B2_ref, b2_ref,
               wf1_ref, bf1_ref, wf2_ref, bf2_ref, wf3_ref, bf3_ref,
               out_ref, xp_s, c1_s, m_s, a2_s, fcin_s):
        f32 = jnp.float32
        bf16 = jnp.bfloat16

        # ---- stage input into a zero-padded, batch-stacked "tall" slab -----
        # rows: (n, padded_h), lanes: (padded_w, cin). Padding done in VMEM.
        xp_s[...] = jnp.zeros_like(xp_s)
        for n in range(bt):
            xp_s[pl.ds(n * hin_p + pad, input_size),
                 pl.ds(pad * ch0, in_w_lanes)] = x_ref[n]

        # ---- conv1 + bias + ReLU: k1 banded MXU matmuls, batch in M --------
        acc = jnp.dot(xp_s[pl.ds(0, m1), :].astype(bf16), B1_ref[0],
                      preferred_element_type=f32)
        for dy in range(1, k1):
            acc = acc + jnp.dot(xp_s[pl.ds(dy, m1), :].astype(bf16), B1_ref[dy],
                                preferred_element_type=f32)
        v = jnp.maximum(acc + b1_ref[...], 0.0)

        # ---- W-pool candidates: q[:, 6w:6w+6] = max(col w, col w+1) --------
        # (conv1 layout has zero edge columns, so this is exact; rides the XLU)
        c1_s[...] = jnp.maximum(v[:, 0:lane_pool], v[:, ch1:ch1 + lane_pool])

        # ---- H-pool (k=2, s=2, pad=1): 2 strided row slabs per sample ------
        # written into the zero-initialized conv2 input slab (rows (n, padded_h')).
        m_s[...] = jnp.zeros_like(m_s)
        for n in range(bt):
            src = n * hin_p
            dst = n * hpl_p + pad
            even = c1_s[pl.ds(src, hp - 1, stride=2), :]       # conv rows 0,2,..
            odd = c1_s[pl.ds(src + 1, hp - 1, stride=2), :]    # conv rows 1,3,..
            m_s[pl.ds(dst, hp - 1), :] = even                  # pooled rows 0..6
            m_s[pl.ds(dst + 1, hp - 1), :] = jnp.maximum(
                m_s[pl.ds(dst + 1, hp - 1), :], odd)           # pooled rows 1..7

        # ---- conv2 + bias + ReLU -------------------------------------------
        # stride-2 lane selection and W zero-padding are baked into B2's band
        # map, so the pooled slab feeds the MXU directly (no scatter / repack).
        acc2 = jnp.dot(m_s[pl.ds(0, m2), :].astype(bf16), B2_ref[0],
                       preferred_element_type=f32)
        for dy in range(1, k2):
            acc2 = acc2 + jnp.dot(m_s[pl.ds(dy, m2), :].astype(bf16), B2_ref[dy],
                                  preferred_element_type=f32)
        a2_s[...] = jnp.maximum(acc2 + b2_ref[...], 0.0)

        # ---- flatten (h, w, c) per sample into one lane-dense fc1 row -------
        # (only 128-lane-aligned, unmasked stores)
        for n in range(bt):
            for r in range(h2):
                fcin_s[pl.ds(n, 1), pl.ds(r * lane_c2, lane_c2)] = \
                    a2_s[pl.ds(n * hpl_p + r, 1), :]

        # ---- fc1/fc2/fc3 (+ReLU) and log-softmax; single K=1024 fc1 matmul --
        y = jnp.dot(fcin_s[...].astype(bf16), wf1_ref[...],
                    preferred_element_type=f32) + bf1_ref[...]
        y = jnp.maximum(y, 0.0)
        y = jnp.dot(y.astype(bf16), wf2_ref[...],
                    preferred_element_type=f32) + bf2_ref[...]
        y = jnp.maximum(y, 0.0)
        y = jnp.dot(y.astype(bf16), wf3_ref[...],
                    preferred_element_type=f32) + bf3_ref[...]
        mx = jnp.max(y, axis=-1, keepdims=True)
        lse = jnp.log(jnp.sum(jnp.exp(y - mx), axis=-1, keepdims=True))
        out_ref[...] = (y - mx - lse).astype(out_ref.dtype)

    # --------------------- one-time weight packing --------------------------
    def prepare_params(params):
        w1 = np.asarray(params["conv1_w"], np.float32)   # (6, 3, 7, 7)
        w2 = np.asarray(params["conv2_w"], np.float32)   # (16, 6, 5, 5)

        # conv1 band matrix. Output columns are shifted by +1 block so the
        # W-pool can use a uniform (col w, col w+1) max with zero edge columns.
        B1 = np.zeros((k1, lane_in1, lane_c1), np.float32)
        for dy in range(k1):
            for dx in range(k1):
                blk = w1[:, :, dy, dx].T                 # (cin, cout)
                for w in range(h1):
                    B1[dy, (w + dx) * ch0:(w + dx + 1) * ch0,
                       (w + 1) * ch1:(w + 2) * ch1] = blk

        # conv2 band matrix reads directly from the 90-lane W-max layout:
        # pooled column j lives in lane block 2*j; out-of-range (pad) columns
        # simply get no band entry.
        B2 = np.zeros((k2, lane_pool, lane_c2), np.float32)
        for dy in range(k2):
            for dx in range(k2):
                blk = w2[:, :, dy, dx].T                 # (6, 16)
                for wp in range(h2):
                    j = wp + dx - pad
                    if 0 <= j < hp:
                        B2[dy, 2 * j * ch1:(2 * j + 1) * ch1,
                           wp * ch2:(wp + 1) * ch2] = blk

        b1t = np.zeros((1, lane_c1), np.float32)
        b1t[0, ch1:(h1 + 1) * ch1] = np.tile(
            np.asarray(params["conv1_b"], np.float32), h1)
        b2t = np.tile(np.asarray(params["conv2_b"], np.float32), h2)[None, :]

        # fc1 rows permuted from torch's (c, h, w) flatten order to (h, w, c).
        fw1 = np.asarray(params["fc1_w"], np.float32).reshape(FC1_OUT, ch2, h2, h2)
        fw1 = np.transpose(fw1, (2, 3, 1, 0)).reshape(fc1_in, FC1_OUT)

        def bf(a):
            return jnp.asarray(np.asarray(a, np.float32)).astype(jnp.bfloat16)

        def f32(a):
            return jnp.asarray(np.asarray(a, np.float32))

        return {
            "B1": bf(B1), "b1": f32(b1t),
            "B2": bf(B2), "b2": f32(b2t),
            "Wf1": bf(fw1), "bf1": f32(np.asarray(params["fc1_b"])[None, :]),
            "Wf2": bf(np.asarray(params["fc2_w"]).T),
            "bf2": f32(np.asarray(params["fc2_b"])[None, :]),
            "Wf3": bf(np.asarray(params["fc3_w"]).T),
            "bf3": f32(np.asarray(params["fc3_b"])[None, :]),
        }

    def _const_spec(shape):
        nd = len(shape)
        return pl.BlockSpec(tuple(shape), lambda g, _nd=nd: (0,) * _nd)

    # ------------------------------ wrapper ---------------------------------
    @jax.jit
    def forward(x_nchw, packed):
        # NCHW -> NHWC, pack (w, cin) onto lanes; zero padding happens in-kernel.
        x = jnp.transpose(x_nchw.astype(jnp.float32), (0, 2, 3, 1))
        x = x.reshape(batch, input_size, in_w_lanes)

        weights = (packed["B1"], packed["b1"], packed["B2"], packed["b2"],
                   packed["Wf1"], packed["bf1"], packed["Wf2"], packed["bf2"],
                   packed["Wf3"], packed["bf3"])

        in_specs = [pl.BlockSpec((bt, input_size, in_w_lanes),
                                 lambda g: (g, 0, 0))]
        in_specs += [_const_spec(w.shape) for w in weights]

        return pl.pallas_call(
            kernel,
            out_shape=jax.ShapeDtypeStruct((batch, output_size), jnp.float32),
            grid=(n_steps,),
            in_specs=in_specs,
            out_specs=pl.BlockSpec((bt, output_size), lambda g: (g, 0)),
            scratch_shapes=[
                pltpu.VMEM((bt * hin_p, lane_in1), jnp.float32),   # padded input
                pltpu.VMEM((m1, lane_pool), jnp.float32),          # conv1 / W-max
                pltpu.VMEM((bt * hpl_p, lane_pool), jnp.float32),  # pooled (padded)
                pltpu.VMEM((m2, lane_c2), jnp.float32),            # conv2 out
                pltpu.VMEM((bt, fc1_in), jnp.float32),             # fc1 input
            ],
            compiler_params=pltpu.CompilerParams(
                dimension_semantics=("parallel",)),
        )(x, *weights)

    return prepare_params, forward


# ----------------------- pure-JAX reference (for checking) ------------------
def reference_forward(x_nchw, params, round_to_bf16=False):
    if round_to_bf16:
        def rnd(a):
            return a.astype(jnp.bfloat16).astype(jnp.float32)
    else:
        def rnd(a):
            return a

    x = jnp.transpose(x_nchw.astype(jnp.float32), (0, 2, 3, 1))       # NHWC
    w1 = jnp.transpose(params["conv1_w"], (2, 3, 1, 0))               # HWIO
    y = lax.conv_general_dilated(rnd(x), rnd(w1), (1, 1), [(2, 2), (2, 2)],
                                 dimension_numbers=("NHWC", "HWIO", "NHWC"),
                                 precision=lax.Precision.HIGHEST)
    y = jax.nn.relu(y + params["conv1_b"])
    y = lax.reduce_window(y, -jnp.inf, lax.max, (1, 2, 2, 1), (1, 2, 2, 1),
                          ((0, 0), (1, 1), (1, 1), (0, 0)))
    w2 = jnp.transpose(params["conv2_w"], (2, 3, 1, 0))
    y = lax.conv_general_dilated(rnd(y), rnd(w2), (1, 1), [(2, 2), (2, 2)],
                                 dimension_numbers=("NHWC", "HWIO", "NHWC"),
                                 precision=lax.Precision.HIGHEST)
    y = jax.nn.relu(y + params["conv2_b"])
    y = jnp.transpose(y, (0, 3, 1, 2)).reshape(y.shape[0], -1)        # torch flatten
    y = jax.nn.relu(rnd(y) @ rnd(params["fc1_w"].T) + params["fc1_b"])
    y = jax.nn.relu(rnd(y) @ rnd(params["fc2_w"].T) + params["fc2_b"])
    y = rnd(y) @ rnd(params["fc3_w"].T) + params["fc3_b"]
    return jax.nn.log_softmax(y, axis=1)


# --------------------------- parameter construction -------------------------
def init_params(key, input_size, output_size):
    """Deterministic synthetic parameters with PyTorch-convention shapes."""
    c_kernels, in_channels, out_channels = [7, 5], [3, 6], [6, 16]
    p_kernel, p_stride, padding = [2, 2], [2, 2], 2

    size_out = input_size
    for i, k in enumerate(c_kernels):
        size_out = math.floor((size_out + 2 * padding - (k - 1) - 1) / 1 + 1)
        if i % 3 == 0:
            size_out = math.floor(
                (size_out + 2 * 1 - (p_kernel[0] - 1) - 1) / p_stride[0] + 1)

    fc1_in = size_out * size_out * out_channels[-1]
    keys = jax.random.split(key, 10)

    def nrm(k, shape, scale):
        return (scale * jax.random.normal(k, shape)).astype(jnp.float32)

    params = {
        "conv1_w": nrm(keys[0], (out_channels[0], in_channels[0],
                                 c_kernels[0], c_kernels[0]), 0.05),
        "conv1_b": nrm(keys[1], (out_channels[0],), 0.05),
        "conv2_w": nrm(keys[2], (out_channels[1], in_channels[1],
                                 c_kernels[1], c_kernels[1]), 0.05),
        "conv2_b": nrm(keys[3], (out_channels[1],), 0.05),
        "fc1_w": nrm(keys[4], (64, fc1_in), 0.03),
        "fc1_b": nrm(keys[5], (64,), 0.03),
        "fc2_w": nrm(keys[6], (16, 64), 0.1),
        "fc2_b": nrm(keys[7], (16,), 0.1),
        "fc3_w": nrm(keys[8], (output_size, 16), 0.2),
        "fc3_b": nrm(keys[9], (output_size,), 0.2),
    }
    return params, size_out


# ----------------------------------- main -----------------------------------
if __name__ == "__main__":
    input_size, output_size, batch = 16, 10, 2

    key = jax.random.PRNGKey(0)
    kx, kp = jax.random.split(key)
    params, size_out = init_params(kp, input_size, output_size)

    x = jax.random.normal(kx, (batch, 3, input_size, input_size), dtype=jnp.float32)

    prepare_params, forward = make_forward(input_size, output_size, batch)
    packed = prepare_params(params)      # one-time weight packing (off hot path)

    out = jax.block_until_ready(forward(x, packed))

    assert out.shape == (batch, output_size), out.shape
    assert bool(jnp.all(jnp.isfinite(out)))
    # log-softmax rows should (numerically) sum to 1 in prob space
    assert bool(jnp.all(jnp.abs(jnp.sum(jnp.exp(out), axis=1) - 1.0) < 1e-4))

    # Tight check vs. a reference that applies the same bf16 rounding the
    # kernel does (weights + matmul inputs), and a loose semantic check vs.
    # the pure-f32 PyTorch-equivalent reference.
    with jax.default_matmul_precision("highest"):
        ref_bf16 = jax.block_until_ready(
            reference_forward(x, params, round_to_bf16=True))
        ref_f32 = jax.block_until_ready(
            reference_forward(x, params, round_to_bf16=False))

    err_tight = float(jnp.max(jnp.abs(out - ref_bf16)))
    err_loose = float(jnp.max(jnp.abs(out - ref_f32)))
    assert err_tight < 2e-3, ("bf16-matched reference mismatch", err_tight)
    assert err_loose < 5e-2, ("f32 reference mismatch", err_loose)

    print("KERNEL_OK")
</pallas_src>

<mosaic_0001>
module attributes {stable_mosaic.version = 11 : i64} {
  func.func @kernel(%arg0: i32, %arg1: memref<2x16x48xf32, #tpu.memory_space<vmem>>, %arg2: memref<7x60x96xbf16, #tpu.memory_space<vmem>>, %arg3: memref<1x96xf32, #tpu.memory_space<vmem>>, %arg4: memref<5x90x128xbf16, #tpu.memory_space<vmem>>, %arg5: memref<1x128xf32, #tpu.memory_space<vmem>>, %arg6: memref<1024x64xbf16, #tpu.memory_space<vmem>>, %arg7: memref<1x64xf32, #tpu.memory_space<vmem>>, %arg8: memref<64x16xbf16, #tpu.memory_space<vmem>>, %arg9: memref<1x16xf32, #tpu.memory_space<vmem>>, %arg10: memref<16x10xbf16, #tpu.memory_space<vmem>>, %arg11: memref<1x10xf32, #tpu.memory_space<vmem>>, %arg12: memref<2x10xf32, #tpu.memory_space<vmem>>, %arg13: memref<40x60xf32, #tpu.memory_space<vmem>>, %arg14: memref<34x90xf32, #tpu.memory_space<vmem>>, %arg15: memref<24x90xf32, #tpu.memory_space<vmem>>, %arg16: memref<20x128xf32, #tpu.memory_space<vmem>>, %arg17: memref<2x1024xf32, #tpu.memory_space<vmem>>) attributes {dimension_semantics = [#tpu.dimension_semantics<parallel>], iteration_bounds = array<i64: 1>, scalar_prefetch = 0 : i64, scratch_operands = 5 : i64, tpu.core_type = #tpu.core_type<tc>, window_params = [{transform_indices = @transform_0, window_bounds = array<i64: 2, 16, 48>}, {pipeline_mode = #tpu.pipeline_mode<synchronous>, transform_indices = @transform_1, window_bounds = array<i64: 7, 60, 96>}, {pipeline_mode = #tpu.pipeline_mode<synchronous>, transform_indices = @transform_2, window_bounds = array<i64: 1, 96>}, {pipeline_mode = #tpu.pipeline_mode<synchronous>, transform_indices = @transform_3, window_bounds = array<i64: 5, 90, 128>}, {pipeline_mode = #tpu.pipeline_mode<synchronous>, transform_indices = @transform_4, window_bounds = array<i64: 1, 128>}, {pipeline_mode = #tpu.pipeline_mode<synchronous>, transform_indices = @transform_5, window_bounds = array<i64: 1024, 64>}, {pipeline_mode = #tpu.pipeline_mode<synchronous>, transform_indices = @transform_6, window_bounds = array<i64: 1, 64>}, {pipeline_mode = #tpu.pipeline_mode<synchronous>, transform_indices = @transform_7, window_bounds = array<i64: 64, 16>}, {pipeline_mode = #tpu.pipeline_mode<synchronous>, transform_indices = @transform_8, window_bounds = array<i64: 1, 16>}, {pipeline_mode = #tpu.pipeline_mode<synchronous>, transform_indices = @transform_9, window_bounds = array<i64: 16, 10>}, {pipeline_mode = #tpu.pipeline_mode<synchronous>, transform_indices = @transform_10, window_bounds = array<i64: 1, 10>}, {transform_indices = @transform_11, window_bounds = array<i64: 2, 10>}]} {
    %cst = arith.constant 0.000000e+00 : f32
    %0 = vector.broadcast %cst : f32 to vector<40x60xf32>
    %c0 = arith.constant 0 : index
    %c0_0 = arith.constant 0 : index
    %1 = vector.load %arg13[%c0, %c0_0] : memref<40x60xf32, #tpu.memory_space<vmem>>, vector<40x60xf32>
    tpu.vector_store %arg13[%c0, %c0_0], %0 {strides = array<i32>} : memref<40x60xf32, #tpu.memory_space<vmem>>, vector<40x60xf32>,
    %c0_1 = arith.constant 0 : index
    %c0_2 = arith.constant 0 : index
    %c0_3 = arith.constant 0 : index
    %2 = vector.load %arg1[%c0_1, %c0_2, %c0_3] : memref<2x16x48xf32, #tpu.memory_space<vmem>>, vector<1x16x48xf32>
    %3 = vector.shape_cast %2 : vector<1x16x48xf32> to vector<16x48xf32>
    %c2 = arith.constant 2 : index
    %c6 = arith.constant 6 : index
    %4 = vector.load %arg13[%c2, %c6] : memref<40x60xf32, #tpu.memory_space<vmem>>, vector<16x48xf32>
    tpu.vector_store %arg13[%c2, %c6], %3 {strides = array<i32>} : memref<40x60xf32, #tpu.memory_space<vmem>>, vector<16x48xf32>,
    %c1 = arith.constant 1 : index
    %c0_4 = arith.constant 0 : index
    %c0_5 = arith.constant 0 : index
    %5 = vector.load %arg1[%c1, %c0_4, %c0_5] : memref<2x16x48xf32, #tpu.memory_space<vmem>>, vector<1x16x48xf32>
    %6 = vector.shape_cast %5 : vector<1x16x48xf32> to vector<16x48xf32>
    %c22 = arith.constant 22 : index
    %c6_6 = arith.constant 6 : index
    %7 = vector.load %arg13[%c22, %c6_6] : memref<40x60xf32, #tpu.memory_space<vmem>>, vector<16x48xf32>
    tpu.vector_store %arg13[%c22, %c6_6], %6 {strides = array<i32>} : memref<40x60xf32, #tpu.memory_space<vmem>>, vector<16x48xf32>,
    %c0_7 = arith.constant 0 : index
    %c0_8 = arith.constant 0 : index
    %8 = vector.load %arg13[%c0_7, %c0_8] : memref<40x60xf32, #tpu.memory_space<vmem>>, vector<34x60xf32>
    %9 = arith.truncf %8 : vector<34x60xf32> to vector<34x60xbf16>
    %c0_9 = arith.constant 0 : index
    %c0_10 = arith.constant 0 : index
    %c0_11 = arith.constant 0 : index
    %10 = vector.load %arg2[%c0_9, %c0_10, %c0_11] : memref<7x60x96xbf16, #tpu.memory_space<vmem>>, vector<1x60x96xbf16>
    %11 = vector.shape_cast %10 : vector<1x60x96xbf16> to vector<60x96xbf16>
    %cst_12 = arith.constant dense<0.000000e+00> : vector<34x96xf32>
    %12 = tpu.matmul %9, %11, %cst_12 {dimension_numbers = #tpu.dot_dimension_numbers<[1], [0], [0], [1], [0, 0, 1, 1], [], []>} : vector<34x60xbf16>, vector<60x96xbf16>, vector<34x96xf32> -> vector<34x96xf32>
    %c1_13 = arith.constant 1 : index
    %c0_14 = arith.constant 0 : index
    %13 = vector.load %arg13[%c1_13, %c0_14] : memref<40x60xf32, #tpu.memory_space<vmem>>, vector<34x60xf32>
    %14 = arith.truncf %13 : vector<34x60xf32> to vector<34x60xbf16>
    %c1_15 = arith.constant 1 : index
    %c0_16 = arith.constant 0 : index
    %c0_17 = arith.constant 0 : index
    %15 = vector.load %arg2[%c1_15, %c0_16, %c0_17] : memref<7x60x96xbf16, #tpu.memory_space<vmem>>, vector<1x60x96xbf16>
    %16 = vector.shape_cast %15 : vector<1x60x96xbf16> to vector<60x96xbf16>
    %cst_18 = arith.constant dense<0.000000e+00> : vector<34x96xf32>
    %17 = tpu.matmul %14, %16, %cst_18 {dimension_numbers = #tpu.dot_dimension_numbers<[1], [0], [0], [1], [0, 0, 1, 1], [], []>} : vector<34x60xbf16>, vector<60x96xbf16>, vector<34x96xf32> -> vector<34x96xf32>
    %18 = arith.addf %12, %17 : vector<34x96xf32>
    %c2_19 = arith.constant 2 : index
    %c0_20 = arith.constant 0 : index
    %19 = vector.load %arg13[%c2_19, %c0_20] : memref<40x60xf32, #tpu.memory_space<vmem>>, vector<34x60xf32>
    %20 = arith.truncf %19 : vector<34x60xf32> to vector<34x60xbf16>
    %c2_21 = arith.constant 2 : index
    %c0_22 = arith.constant 0 : index
    %c0_23 = arith.constant 0 : index
    %21 = vector.load %arg2[%c2_21, %c0_22, %c0_23] : memref<7x60x96xbf16, #tpu.memory_space<vmem>>, vector<1x60x96xbf16>
    %22 = vector.shape_cast %21 : vector<1x60x96xbf16> to vector<60x96xbf16>
    %cst_24 = arith.constant dense<0.000000e+00> : vector<34x96xf32>
    %23 = tpu.matmul %20, %22, %cst_24 {dimension_numbers = #tpu.dot_dimension_numbers<[1], [0], [0], [1], [0, 0, 1, 1], [], []>} : vector<34x60xbf16>, vector<60x96xbf16>, vector<34x96xf32> -> vector<34x96xf32>
    %24 = arith.addf %18, %23 : vector<34x96xf32>
    %c3 = arith.constant 3 : index
    %c0_25 = arith.constant 0 : index
    %25 = vector.load %arg13[%c3, %c0_25] : memref<40x60xf32, #tpu.memory_space<vmem>>, vector<34x60xf32>
    %26 = arith.truncf %25 : vector<34x60xf32> to vector<34x60xbf16>
    %c3_26 = arith.constant 3 : index
    %c0_27 = arith.constant 0 : index
    %c0_28 = arith.constant 0 : index
    %27 = vector.load %arg2[%c3_26, %c0_27, %c0_28] : memref<7x60x96xbf16, #tpu.memory_space<vmem>>, vector<1x60x96xbf16>
    %28 = vector.shape_cast %27 : vector<1x60x96xbf16> to vector<60x96xbf16>
    %cst_29 = arith.constant dense<0.000000e+00> : vector<34x96xf32>
    %29 = tpu.matmul %26, %28, %cst_29 {dimension_numbers = #tpu.dot_dimension_numbers<[1], [0], [0], [1], [0, 0, 1, 1], [], []>} : vector<34x60xbf16>, vector<60x96xbf16>, vector<34x96xf32> -> vector<34x96xf32>
    %30 = arith.addf %24, %29 : vector<34x96xf32>
    %c4 = arith.constant 4 : index
    %c0_30 = arith.constant 0 : index
    %31 = vector.load %arg13[%c4, %c0_30] : memref<40x60xf32, #tpu.memory_space<vmem>>, vector<34x60xf32>
    %32 = arith.truncf %31 : vector<34x60xf32> to vector<34x60xbf16>
    %c4_31 = arith.constant 4 : index
    %c0_32 = arith.constant 0 : index
    %c0_33 = arith.constant 0 : index
    %33 = vector.load %arg2[%c4_31, %c0_32, %c0_33] : memref<7x60x96xbf16, #tpu.memory_space<vmem>>, vector<1x60x96xbf16>
    %34 = vector.shape_cast %33 : vector<1x60x96xbf16> to vector<60x96xbf16>
    %cst_34 = arith.constant dense<0.000000e+00> : vector<34x96xf32>
    %35 = tpu.matmul %32, %34, %cst_34 {dimension_numbers = #tpu.dot_dimension_numbers<[1], [0], [0], [1], [0, 0, 1, 1], [], []>} : vector<34x60xbf16>, vector<60x96xbf16>, vector<34x96xf32> -> vector<34x96xf32>
    %36 = arith.addf %30, %35 : vector<34x96xf32>
    %c5 = arith.constant 5 : index
    %c0_35 = arith.constant 0 : index
    %37 = vector.load %arg13[%c5, %c0_35] : memref<40x60xf32, #tpu.memory_space<vmem>>, vector<34x60xf32>
    %38 = arith.truncf %37 : vector<34x60xf32> to vector<34x60xbf16>
    %c5_36 = arith.constant 5 : index
    %c0_37 = arith.constant 0 : index
    %c0_38 = arith.constant 0 : index
    %39 = vector.load %arg2[%c5_36, %c0_37, %c0_38] : memref<7x60x96xbf16, #tpu.memory_space<vmem>>, vector<1x60x96xbf16>
    %40 = vector.shape_cast %39 : vector<1x60x96xbf16> to vector<60x96xbf16>
    %cst_39 = arith.constant dense<0.000000e+00> : vector<34x96xf32>
    %41 = tpu.matmul %38, %40, %cst_39 {dimension_numbers = #tpu.dot_dimension_numbers<[1], [0], [0], [1], [0, 0, 1, 1], [], []>} : vector<34x60xbf16>, vector<60x96xbf16>, vector<34x96xf32> -> vector<34x96xf32>
    %42 = arith.addf %36, %41 : vector<34x96xf32>
    %c6_40 = arith.constant 6 : index
    %c0_41 = arith.constant 0 : index
    %43 = vector.load %arg13[%c6_40, %c0_41] : memref<40x60xf32, #tpu.memory_space<vmem>>, vector<34x60xf32>
    %44 = arith.truncf %43 : vector<34x60xf32> to vector<34x60xbf16>
    %c6_42 = arith.constant 6 : index
    %c0_43 = arith.constant 0 : index
    %c0_44 = arith.constant 0 : index
    %45 = vector.load %arg2[%c6_42, %c0_43, %c0_44] : memref<7x60x96xbf16, #tpu.memory_space<vmem>>, vector<1x60x96xbf16>
    %46 = vector.shape_cast %45 : vector<1x60x96xbf16> to vector<60x96xbf16>
    %cst_45 = arith.constant dense<0.000000e+00> : vector<34x96xf32>
    %47 = tpu.matmul %44, %46, %cst_45 {dimension_numbers = #tpu.dot_dimension_numbers<[1], [0], [0], [1], [0, 0, 1, 1], [], []>} : vector<34x60xbf16>, vector<60x96xbf16>, vector<34x96xf32> -> vector<34x96xf32>
    %48 = arith.addf %42, %47 : vector<34x96xf32>
    %c0_46 = arith.constant 0 : index
    %c0_47 = arith.constant 0 : index
    %49 = vector.load %arg3[%c0_46, %c0_47] : memref<1x96xf32, #tpu.memory_space<vmem>>, vector<1x96xf32>
    %50 = vector.broadcast %49 : vector<1x96xf32> to vector<34x96xf32>
    %51 = arith.addf %48, %50 : vector<34x96xf32>
    %cst_48 = arith.constant 0.000000e+00 : f32
    %52 = vector.broadcast %cst_48 : f32 to vector<34x96xf32>
    %53 = arith.maximumf %51, %52 : vector<34x96xf32>
    %54 = vector.extract_strided_slice %53 {offsets = [0, 0], sizes = [34, 90], strides = [1, 1]} : vector<34x96xf32> to vector<34x90xf32>
    %55 = vector.extract_strided_slice %53 {offsets = [0, 6], sizes = [34, 90], strides = [1, 1]} : vector<34x96xf32> to vector<34x90xf32>
    %56 = arith.maximumf %54, %55 : vector<34x90xf32>
    %c0_49 = arith.constant 0 : index
    %c0_50 = arith.constant 0 : index
    %57 = vector.load %arg14[%c0_49, %c0_50] : memref<34x90xf32, #tpu.memory_space<vmem>>, vector<34x90xf32>
    tpu.vector_store %arg14[%c0_49, %c0_50], %56 {strides = array<i32>} : memref<34x90xf32, #tpu.memory_space<vmem>>, vector<34x90xf32>,
    %cst_51 = arith.constant 0.000000e+00 : f32
    %58 = vector.broadcast %cst_51 : f32 to vector<24x90xf32>
    %c0_52 = arith.constant 0 : index
    %c0_53 = arith.constant 0 : index
    %59 = vector.load %arg15[%c0_52, %c0_53] : memref<24x90xf32, #tpu.memory_space<vmem>>, vector<24x90xf32>
    tpu.vector_store %arg15[%c0_52, %c0_53], %58 {strides = array<i32>} : memref<24x90xf32, #tpu.memory_space<vmem>>, vector<24x90xf32>,
    %c0_54 = arith.constant 0 : index
    %c0_55 = arith.constant 0 : index
    %60 = tpu.strided_load %arg14[%c0_54, %c0_55] {strides = array<i32: 2, 1>} : memref<34x90xf32, #tpu.memory_space<vmem>>, vector<7x90xf32>
    %c1_56 = arith.constant 1 : index
    %c0_57 = arith.constant 0 : index
    %61 = tpu.strided_load %arg14[%c1_56, %c0_57] {strides = array<i32: 2, 1>} : memref<34x90xf32, #tpu.memory_space<vmem>>, vector<7x90xf32>
    %c2_58 = arith.constant 2 : index
    %c0_59 = arith.constant 0 : index
    %62 = vector.load %arg15[%c2_58, %c0_59] : memref<24x90xf32, #tpu.memory_space<vmem>>, vector<7x90xf32>
    tpu.vector_store %arg15[%c2_58, %c0_59], %60 {strides = array<i32>} : memref<24x90xf32, #tpu.memory_space<vmem>>, vector<7x90xf32>,
    %c3_60 = arith.constant 3 : index
    %c0_61 = arith.constant 0 : index
    %63 = vector.load %arg15[%c3_60, %c0_61] : memref<24x90xf32, #tpu.memory_space<vmem>>, vector<7x90xf32>
    %64 = arith.maximumf %63, %61 : vector<7x90xf32>
    %c3_62 = arith.constant 3 : index
    %c0_63 = arith.constant 0 : index
    %65 = vector.load %arg15[%c3_62, %c0_63] : memref<24x90xf32, #tpu.memory_space<vmem>>, vector<7x90xf32>
    tpu.vector_store %arg15[%c3_62, %c0_63], %64 {strides = array<i32>} : memref<24x90xf32, #tpu.memory_space<vmem>>, vector<7x90xf32>,
    %c20 = arith.constant 20 : index
    %c0_64 = arith.constant 0 : index
    %66 = tpu.strided_load %arg14[%c20, %c0_64] {strides = array<i32: 2, 1>} : memref<34x90xf32, #tpu.memory_space<vmem>>, vector<7x90xf32>
    %c21 = arith.constant 21 : index
    %c0_65 = arith.constant 0 : index
    %67 = tpu.strided_load %arg14[%c21, %c0_65] {strides = array<i32: 2, 1>} : memref<34x90xf32, #tpu.memory_space<vmem>>, vector<7x90xf32>
    %c14 = arith.constant 14 : index
    %c0_66 = arith.constant 0 : index
    %68 = vector.load %arg15[%c14, %c0_66] : memref<24x90xf32, #tpu.memory_space<vmem>>, vector<7x90xf32>
    tpu.vector_store %arg15[%c14, %c0_66], %66 {strides = array<i32>} : memref<24x90xf32, #tpu.memory_space<vmem>>, vector<7x90xf32>,
    %c15 = arith.constant 15 : index
    %c0_67 = arith.constant 0 : index
    %69 = vector.load %arg15[%c15, %c0_67] : memref<24x90xf32, #tpu.memory_space<vmem>>, vector<7x90xf32>
    %70 = arith.maximumf %69, %67 : vector<7x90xf32>
    %c15_68 = arith.constant 15 : index
    %c0_69 = arith.constant 0 : index
    %71 = vector.load %arg15[%c15_68, %c0_69] : memref<24x90xf32, #tpu.memory_space<vmem>>, vector<7x90xf32>
    tpu.vector_store %arg15[%c15_68, %c0_69], %70 {strides = array<i32>} : memref<24x90xf32, #tpu.memory_space<vmem>>, vector<7x90xf32>,
    %c0_70 = arith.constant 0 : index
    %c0_71 = arith.constant 0 : index
    %72 = vector.load %arg15[%c0_70, %c0_71] : memref<24x90xf32, #tpu.memory_space<vmem>>, vector<20x90xf32>
    %73 = arith.truncf %72 : vector<20x90xf32> to vector<20x90xbf16>
    %c0_72 = arith.constant 0 : index
    %c0_73 = arith.constant 0 : index
    %c0_74 = arith.constant 0 : index
    %74 = vector.load %arg4[%c0_72, %c0_73, %c0_74] : memref<5x90x128xbf16, #tpu.memory_space<vmem>>, vector<1x90x128xbf16>
    %75 = vector.shape_cast %74 : vector<1x90x128xbf16> to vector<90x128xbf16>
    %cst_75 = arith.constant dense<0.000000e+00> : vector<20x128xf32>
    %76 = tpu.matmul %73, %75, %cst_75 {dimension_numbers = #tpu.dot_dimension_numbers<[1], [0], [0], [1], [0, 0, 1, 1], [], []>} : vector<20x90xbf16>, vector<90x128xbf16>, vector<20x128xf32> -> vector<20x128xf32>
    %c1_76 = arith.constant 1 : index
    %c0_77 = arith.constant 0 : index
    %77 = vector.load %arg15[%c1_76, %c0_77] : memref<24x90xf32, #tpu.memory_space<vmem>>, vector<20x90xf32>
    %78 = arith.truncf %77 : vector<20x90xf32> to vector<20x90xbf16>
    %c1_78 = arith.constant 1 : index
    %c0_79 = arith.constant 0 : index
    %c0_80 = arith.constant 0 : index
    %79 = vector.load %arg4[%c1_78, %c0_79, %c0_80] : memref<5x90x128xbf16, #tpu.memory_space<vmem>>, vector<1x90x128xbf16>
    %80 = vector.shape_cast %79 : vector<1x90x128xbf16> to vector<90x128xbf16>
    %cst_81 = arith.constant dense<0.000000e+00> : vector<20x128xf32>
    %81 = tpu.matmul %78, %80, %cst_81 {dimension_numbers = #tpu.dot_dimension_numbers<[1], [0], [0], [1], [0, 0, 1, 1], [], []>} : vector<20x90xbf16>, vector<90x128xbf16>, vector<20x128xf32> -> vector<20x128xf32>
    %82 = arith.addf %76, %81 : vector<20x128xf32>
    %c2_82 = arith.constant 2 : index
    %c0_83 = arith.constant 0 : index
    %83 = vector.load %arg15[%c2_82, %c0_83] : memref<24x90xf32, #tpu.memory_space<vmem>>, vector<20x90xf32>
    %84 = arith.truncf %83 : vector<20x90xf32> to vector<20x90xbf16>
    %c2_84 = arith.constant 2 : index
    %c0_85 = arith.constant 0 : index
    %c0_86 = arith.constant 0 : index
    %85 = vector.load %arg4[%c2_84, %c0_85, %c0_86] : memref<5x90x128xbf16, #tpu.memory_space<vmem>>, vector<1x90x128xbf16>
    %86 = vector.shape_cast %85 : vector<1x90x128xbf16> to vector<90x128xbf16>
    %cst_87 = arith.constant dense<0.000000e+00> : vector<20x128xf32>
    %87 = tpu.matmul %84, %86, %cst_87 {dimension_numbers = #tpu.dot_dimension_numbers<[1], [0], [0], [1], [0, 0, 1, 1], [], []>} : vector<20x90xbf16>, vector<90x128xbf16>, vector<20x128xf32> -> vector<20x128xf32>
    %88 = arith.addf %82, %87 : vector<20x128xf32>
    %c3_88 = arith.constant 3 : index
    %c0_89 = arith.constant 0 : index
    %89 = vector.load %arg15[%c3_88, %c0_89] : memref<24x90xf32, #tpu.memory_space<vmem>>, vector<20x90xf32>
    %90 = arith.truncf %89 : vector<20x90xf32> to vector<20x90xbf16>
    %c3_90 = arith.constant 3 : index
    %c0_91 = arith.constant 0 : index
    %c0_92 = arith.constant 0 : index
    %91 = vector.load %arg4[%c3_90, %c0_91, %c0_92] : memref<5x90x128xbf16, #tpu.memory_space<vmem>>, vector<1x90x128xbf16>
    %92 = vector.shape_cast %91 : vector<1x90x128xbf16> to vector<90x128xbf16>
    %cst_93 = arith.constant dense<0.000000e+00> : vector<20x128xf32>
    %93 = tpu.matmul %90, %92, %cst_93 {dimension_numbers = #tpu.dot_dimension_numbers<[1], [0], [0], [1], [0, 0, 1, 1], [], []>} : vector<20x90xbf16>, vector<90x128xbf16>, vector<20x128xf32> -> vector<20x128xf32>
    %94 = arith.addf %88, %93 : vector<20x128xf32>
    %c4_94 = arith.constant 4 : index
    %c0_95 = arith.constant 0 : index
    %95 = vector.load %arg15[%c4_94, %c0_95] : memref<24x90xf32, #tpu.memory_space<vmem>>, vector<20x90xf32>
    %96 = arith.truncf %95 : vector<20x90xf32> to vector<20x90xbf16>
    %c4_96 = arith.constant 4 : index
    %c0_97 = arith.constant 0 : index
    %c0_98 = arith.constant 0 : index
    %97 = vector.load %arg4[%c4_96, %c0_97, %c0_98] : memref<5x90x128xbf16, #tpu.memory_space<vmem>>, vector<1x90x128xbf16>
    %98 = vector.shape_cast %97 : vector<1x90x128xbf16> to vector<90x128xbf16>
    %cst_99 = arith.constant dense<0.000000e+00> : vector<20x128xf32>
    %99 = tpu.matmul %96, %98, %cst_99 {dimension_numbers = #tpu.dot_dimension_numbers<[1], [0], [0], [1], [0, 0, 1, 1], [], []>} : vector<20x90xbf16>, vector<90x128xbf16>, vector<20x128xf32> -> vector<20x128xf32>
    %100 = arith.addf %94, %99 : vector<20x128xf32>
    %c0_100 = arith.constant 0 : index
    %c0_101 = arith.constant 0 : index
    %101 = vector.load %arg5[%c0_100, %c0_101] : memref<1x128xf32, #tpu.memory_space<vmem>>, vector<1x128xf32>
    %102 = vector.broadcast %101 : vector<1x128xf32> to vector<20x128xf32>
    %103 = arith.addf %100, %102 : vector<20x128xf32>
    %cst_102 = arith.constant 0.000000e+00 : f32
    %104 = vector.broadcast %cst_102 : f32 to vector<20x128xf32>
    %105 = arith.maximumf %103, %104 : vector<20x128xf32>
    %c0_103 = arith.constant 0 : index
    %c0_104 = arith.constant 0 : index
    %106 = vector.load %arg16[%c0_103, %c0_104] : memref<20x128xf32, #tpu.memory_space<vmem>>, vector<20x128xf32>
    tpu.vector_store %arg16[%c0_103, %c0_104], %105 {strides = array<i32>} : memref<20x128xf32, #tpu.memory_space<vmem>>, vector<20x128xf32>,
    %c0_105 = arith.constant 0 : index
    %c0_106 = arith.constant 0 : index
    %107 = vector.load %arg16[%c0_105, %c0_106] : memref<20x128xf32, #tpu.memory_space<vmem>>, vector<1x128xf32>
    %c0_107 = arith.constant 0 : index
    %c0_108 = arith.constant 0 : index
    %108 = vector.load %arg17[%c0_107, %c0_108] : memref<2x1024xf32, #tpu.memory_space<vmem>>, vector<1x128xf32>
    tpu.vector_store %arg17[%c0_107, %c0_108], %107 {strides = array<i32>} : memref<2x1024xf32, #tpu.memory_space<vmem>>, vector<1x128xf32>,
    %c1_109 = arith.constant 1 : index
    %c0_110 = arith.constant 0 : index
    %109 = vector.load %arg16[%c1_109, %c0_110] : memref<20x128xf32, #tpu.memory_space<vmem>>, vector<1x128xf32>
    %c0_111 = arith.constant 0 : index
    %c128 = arith.constant 128 : index
    %110 = vector.load %arg17[%c0_111, %c128] : memref<2x1024xf32, #tpu.memory_space<vmem>>, vector<1x128xf32>
    tpu.vector_store %arg17[%c0_111, %c128], %109 {strides = array<i32>} : memref<2x1024xf32, #tpu.memory_space<vmem>>, vector<1x128xf32>,
    %c2_112 = arith.constant 2 : index
    %c0_113 = arith.constant 0 : index
    %111 = vector.load %arg16[%c2_112, %c0_113] : memref<20x128xf32, #tpu.memory_space<vmem>>, vector<1x128xf32>
    %c0_114 = arith.constant 0 : index
    %c256 = arith.constant 256 : index
    %112 = vector.load %arg17[%c0_114, %c256] : memref<2x1024xf32, #tpu.memory_space<vmem>>, vector<1x128xf32>
    tpu.vector_store %arg17[%c0_114, %c256], %111 {strides = array<i32>} : memref<2x1024xf32, #tpu.memory_space<vmem>>, vector<1x128xf32>,
    %c3_115 = arith.constant 3 : index
    %c0_116 = arith.constant 0 : index
    %113 = vector.load %arg16[%c3_115, %c0_116] : memref<20x128xf32, #tpu.memory_space<vmem>>, vector<1x128xf32>
    %c0_117 = arith.constant 0 : index
    %c384 = arith.constant 384 : index
    %114 = vector.load %arg17[%c0_117, %c384] : memref<2x1024xf32, #tpu.memory_space<vmem>>, vector<1x128xf32>
    tpu.vector_store %arg17[%c0_117, %c384], %113 {strides = array<i32>} : memref<2x1024xf32, #tpu.memory_space<vmem>>, vector<1x128xf32>,
    %c4_118 = arith.constant 4 : index
    %c0_119 = arith.constant 0 : index
    %115 = vector.load %arg16[%c4_118, %c0_119] : memref<20x128xf32, #tpu.memory_space<vmem>>, vector<1x128xf32>
    %c0_120 = arith.constant 0 : index
    %c512 = arith.constant 512 : index
    %116 = vector.load %arg17[%c0_120, %c512] : memref<2x1024xf32, #tpu.memory_space<vmem>>, vector<1x128xf32>
    tpu.vector_store %arg17[%c0_120, %c512], %115 {strides = array<i32>} : memref<2x1024xf32, #tpu.memory_space<vmem>>, vector<1x128xf32>,
    %c5_121 = arith.constant 5 : index
    %c0_122 = arith.constant 0 : index
    %117 = vector.load %arg16[%c5_121, %c0_122] : memref<20x128xf32, #tpu.memory_space<vmem>>, vector<1x128xf32>
    %c0_123 = arith.constant 0 : index
    %c640 = arith.constant 640 : index
    %118 = vector.load %arg17[%c0_123, %c640] : memref<2x1024xf32, #tpu.memory_space<vmem>>, vector<1x128xf32>
    tpu.vector_store %arg17[%c0_123, %c640], %117 {strides = array<i32>} : memref<2x1024xf32, #tpu.memory_space<vmem>>, vector<1x128xf32>,
    %c6_124 = arith.constant 6 : index
    %c0_125 = arith.constant 0 : index
    %119 = vector.load %arg16[%c6_124, %c0_125] : memref<20x128xf32, #tpu.memory_space<vmem>>, vector<1x128xf32>
    %c0_126 = arith.constant 0 : index
    %c768 = arith.constant 768 : index
    %120 = vector.load %arg17[%c0_126, %c768] : memref<2x1024xf32, #tpu.memory_space<vmem>>, vector<1x128xf32>
    tpu.vector_store %arg17[%c0_126, %c768], %119 {strides = array<i32>} : memref<2x1024xf32, #tpu.memory_space<vmem>>, vector<1x128xf32>,
    %c7 = arith.constant 7 : index
    %c0_127 = arith.constant 0 : index
    %121 = vector.load %arg16[%c7, %c0_127] : memref<20x128xf32, #tpu.memory_space<vmem>>, vector<1x128xf32>
    %c0_128 = arith.constant 0 : index
    %c896 = arith.constant 896 : index
    %122 = vector.load %arg17[%c0_128, %c896] : memref<2x1024xf32, #tpu.memory_space<vmem>>, vector<1x128xf32>
    tpu.vector_store %arg17[%c0_128, %c896], %121 {strides = array<i32>} : memref<2x1024xf32, #tpu.memory_space<vmem>>, vector<1x128xf32>,
    %c12 = arith.constant 12 : index
    %c0_129 = arith.constant 0 : index
    %123 = vector.load %arg16[%c12, %c0_129] : memref<20x128xf32, #tpu.memory_space<vmem>>, vector<1x128xf32>
    %c1_130 = arith.constant 1 : index
    %c0_131 = arith.constant 0 : index
    %124 = vector.load %arg17[%c1_130, %c0_131] : memref<2x1024xf32, #tpu.memory_space<vmem>>, vector<1x128xf32>
    tpu.vector_store %arg17[%c1_130, %c0_131], %123 {strides = array<i32>} : memref<2x1024xf32, #tpu.memory_space<vmem>>, vector<1x128xf32>,
    %c13 = arith.constant 13 : index
    %c0_132 = arith.constant 0 : index
    %125 = vector.load %arg16[%c13, %c0_132] : memref<20x128xf32, #tpu.memory_space<vmem>>, vector<1x128xf32>
    %c1_133 = arith.constant 1 : index
    %c128_134 = arith.constant 128 : index
    %126 = vector.load %arg17[%c1_133, %c128_134] : memref<2x1024xf32, #tpu.memory_space<vmem>>, vector<1x128xf32>
    tpu.vector_store %arg17[%c1_133, %c128_134], %125 {strides = array<i32>} : memref<2x1024xf32, #tpu.memory_space<vmem>>, vector<1x128xf32>,
    %c14_135 = arith.constant 14 : index
    %c0_136 = arith.constant 0 : index
    %127 = vector.load %arg16[%c14_135, %c0_136] : memref<20x128xf32, #tpu.memory_space<vmem>>, vector<1x128xf32>
    %c1_137 = arith.constant 1 : index
    %c256_138 = arith.constant 256 : index
    %128 = vector.load %arg17[%c1_137, %c256_138] : memref<2x1024xf32, #tpu.memory_space<vmem>>, vector<1x128xf32>
    tpu.vector_store %arg17[%c1_137, %c256_138], %127 {strides = array<i32>} : memref<2x1024xf32, #tpu.memory_space<vmem>>, vector<1x128xf32>,
    %c15_139 = arith.constant 15 : index
    %c0_140 = arith.constant 0 : index
    %129 = vector.load %arg16[%c15_139, %c0_140] : memref<20x128xf32, #tpu.memory_space<vmem>>, vector<1x128xf32>
    %c1_141 = arith.constant 1 : index
    %c384_142 = arith.constant 384 : index
    %130 = vector.load %arg17[%c1_141, %c384_142] : memref<2x1024xf32, #tpu.memory_space<vmem>>, vector<1x128xf32>
    tpu.vector_store %arg17[%c1_141, %c384_142], %129 {strides = array<i32>} : memref<2x1024xf32, #tpu.memory_space<vmem>>, vector<1x128xf32>,
    %c16 = arith.constant 16 : index
    %c0_143 = arith.constant 0 : index
    %131 = vector.load %arg16[%c16, %c0_143] : memref<20x128xf32, #tpu.memory_space<vmem>>, vector<1x128xf32>
    %c1_144 = arith.constant 1 : index
    %c512_145 = arith.constant 512 : index
    %132 = vector.load %arg17[%c1_144, %c512_145] : memref<2x1024xf32, #tpu.memory_space<vmem>>, vector<1x128xf32>
    tpu.vector_store %arg17[%c1_144, %c512_145], %131 {strides = array<i32>} : memref<2x1024xf32, #tpu.memory_space<vmem>>, vector<1x128xf32>,
    %c17 = arith.constant 17 : index
    %c0_146 = arith.constant 0 : index
    %133 = vector.load %arg16[%c17, %c0_146] : memref<20x128xf32, #tpu.memory_space<vmem>>, vector<1x128xf32>
    %c1_147 = arith.constant 1 : index
    %c640_148 = arith.constant 640 : index
    %134 = vector.load %arg17[%c1_147, %c640_148] : memref<2x1024xf32, #tpu.memory_space<vmem>>, vector<1x128xf32>
    tpu.vector_store %arg17[%c1_147, %c640_148], %133 {strides = array<i32>} : memref<2x1024xf32, #tpu.memory_space<vmem>>, vector<1x128xf32>,
    %c18 = arith.constant 18 : index
    %c0_149 = arith.constant 0 : index
    %135 = vector.load %arg16[%c18, %c0_149] : memref<20x128xf32, #tpu.memory_space<vmem>>, vector<1x128xf32>
    %c1_150 = arith.constant 1 : index
    %c768_151 = arith.constant 768 : index
    %136 = vector.load %arg17[%c1_150, %c768_151] : memref<2x1024xf32, #tpu.memory_space<vmem>>, vector<1x128xf32>
    tpu.vector_store %arg17[%c1_150, %c768_151], %135 {strides = array<i32>} : memref<2x1024xf32, #tpu.memory_space<vmem>>, vector<1x128xf32>,
    %c19 = arith.constant 19 : index
    %c0_152 = arith.constant 0 : index
    %137 = vector.load %arg16[%c19, %c0_152] : memref<20x128xf32, #tpu.memory_space<vmem>>, vector<1x128xf32>
    %c1_153 = arith.constant 1 : index
    %c896_154 = arith.constant 896 : index
    %138 = vector.load %arg17[%c1_153, %c896_154] : memref<2x1024xf32, #tpu.memory_space<vmem>>, vector<1x128xf32>
    tpu.vector_store %arg17[%c1_153, %c896_154], %137 {strides = array<i32>} : memref<2x1024xf32, #tpu.memory_space<vmem>>, vector<1x128xf32>,
    %c0_155 = arith.constant 0 : index
    %c0_156 = arith.constant 0 : index
    %139 = vector.load %arg17[%c0_155, %c0_156] : memref<2x1024xf32, #tpu.memory_space<vmem>>, vector<2x1024xf32>
    %140 = arith.truncf %139 : vector<2x1024xf32> to vector<2x1024xbf16>
    %c0_157 = arith.constant 0 : index
    %c0_158 = arith.constant 0 : index
    %141 = vector.load %arg6[%c0_157, %c0_158] : memref<1024x64xbf16, #tpu.memory_space<vmem>>, vector<1024x64xbf16>
    %cst_159 = arith.constant dense<0.000000e+00> : vector<2x64xf32>
    %142 = tpu.matmul %140, %141, %cst_159 {dimension_numbers = #tpu.dot_dimension_numbers<[1], [0], [0], [1], [0, 0, 1, 1], [], []>} : vector<2x1024xbf16>, vector<1024x64xbf16>, vector<2x64xf32> -> vector<2x64xf32>
    %c0_160 = arith.constant 0 : index
    %c0_161 = arith.constant 0 : index
    %143 = vector.load %arg7[%c0_160, %c0_161] : memref<1x64xf32, #tpu.memory_space<vmem>>, vector<1x64xf32>
    %144 = vector.broadcast %143 : vector<1x64xf32> to vector<2x64xf32>
    %145 = arith.addf %142, %144 : vector<2x64xf32>
    %cst_162 = arith.constant 0.000000e+00 : f32
    %146 = vector.broadcast %cst_162 : f32 to vector<2x64xf32>
    %147 = arith.maximumf %145, %146 : vector<2x64xf32>
    %148 = arith.truncf %147 : vector<2x64xf32> to vector<2x64xbf16>
    %c0_163 = arith.constant 0 : index
    %c0_164 = arith.constant 0 : index
    %149 = vector.load %arg8[%c0_163, %c0_164] : memref<64x16xbf16, #tpu.memory_space<vmem>>, vector<64x16xbf16>
    %cst_165 = arith.constant dense<0.000000e+00> : vector<2x16xf32>
    %150 = tpu.matmul %148, %149, %cst_165 {dimension_numbers = #tpu.dot_dimension_numbers<[1], [0], [0], [1], [0, 0, 1, 1], [], []>} : vector<2x64xbf16>, vector<64x16xbf16>, vector<2x16xf32> -> vector<2x16xf32>
    %c0_166 = arith.constant 0 : index
    %c0_167 = arith.constant 0 : index
    %151 = vector.load %arg9[%c0_166, %c0_167] : memref<1x16xf32, #tpu.memory_space<vmem>>, vector<1x16xf32>
    %152 = vector.broadcast %151 : vector<1x16xf32> to vector<2x16xf32>
    %153 = arith.addf %150, %152 : vector<2x16xf32>
    %cst_168 = arith.constant 0.000000e+00 : f32
    %154 = vector.broadcast %cst_168 : f32 to vector<2x16xf32>
    %155 = arith.maximumf %153, %154 : vector<2x16xf32>
    %156 = arith.truncf %155 : vector<2x16xf32> to vector<2x16xbf16>
    %c0_169 = arith.constant 0 : index
    %c0_170 = arith.constant 0 : index
    %157 = vector.load %arg10[%c0_169, %c0_170] : memref<16x10xbf16, #tpu.memory_space<vmem>>, vector<16x10xbf16>
    %cst_171 = arith.constant dense<0.000000e+00> : vector<2x10xf32>
    %158 = tpu.matmul %156, %157, %cst_171 {dimension_numbers = #tpu.dot_dimension_numbers<[1], [0], [0], [1], [0, 0, 1, 1], [], []>} : vector<2x16xbf16>, vector<16x10xbf16>, vector<2x10xf32> -> vector<2x10xf32>
    %c0_172 = arith.constant 0 : index
    %c0_173 = arith.constant 0 : index
    %159 = vector.load %arg11[%c0_172, %c0_173] : memref<1x10xf32, #tpu.memory_space<vmem>>, vector<1x10xf32>
    %160 = vector.broadcast %159 : vector<1x10xf32> to vector<2x10xf32>
    %161 = arith.addf %158, %160 : vector<2x10xf32>
    %cst_174 = arith.constant dense<0xFF800000> : vector<2xf32>
    %162 = vector.multi_reduction <maximumf>, %161, %cst_174 [1] : vector<2x10xf32> to vector<2xf32>
    %163 = vector.shape_cast %162 : vector<2xf32> to vector<2x1xf32>
    %164 = vector.broadcast %163 : vector<2x1xf32> to vector<2x10xf32>
    %165 = arith.subf %161, %164 : vector<2x10xf32>
    %166 = math.exp %165 : vector<2x10xf32>
    %cst_175 = arith.constant dense<0.000000e+00> : vector<2xf32>
    %167 = vector.multi_reduction <add>, %166, %cst_175 [1] : vector<2x10xf32> to vector<2xf32>
    %168 = vector.shape_cast %167 : vector<2xf32> to vector<2x1xf32>
    %169 = math.log %168 : vector<2x1xf32>
    %170 = vector.broadcast %163 : vector<2x1xf32> to vector<2x10xf32>
    %171 = arith.subf %161, %170 : vector<2x10xf32>
    %172 = vector.broadcast %169 : vector<2x1xf32> to vector<2x10xf32>
    %173 = arith.subf %171, %172 : vector<2x10xf32>
    %c0_176 = arith.constant 0 : index
    %c0_177 = arith.constant 0 : index
    %174 = vector.load %arg12[%c0_176, %c0_177] : memref<2x10xf32, #tpu.memory_space<vmem>>, vector<2x10xf32>
    tpu.vector_store %arg12[%c0_176, %c0_177], %173 {strides = array<i32>} : memref<2x10xf32, #tpu.memory_space<vmem>>, vector<2x10xf32>,
    return
  }
  func.func @transform_0(%arg0: i32) -> (i32, i32, i32) {
    %c0_i32 = arith.constant 0 : i32
    %c0_i32_0 = arith.constant 0 : i32
    %c0_i32_1 = arith.constant 0 : i32
    return %arg0, %c0_i32, %c0_i32_0 : i32, i32, i32
  }
  func.func @transform_1(%arg0: i32) -> (i32, i32, i32) {
    %c0_i32 = arith.constant 0 : i32
    %c0_i32_0 = arith.constant 0 : i32
    %c0_i32_1 = arith.constant 0 : i32
    %c0_i32_2 = arith.constant 0 : i32
    return %c0_i32, %c0_i32_0, %c0_i32_1 : i32, i32, i32
  }
  func.func @transform_2(%arg0: i32) -> (i32, i32) {
    %c0_i32 = arith.constant 0 : i32
    %c0_i32_0 = arith.constant 0 : i32
    %c0_i32_1 = arith.constant 0 : i32
    return %c0_i32, %c0_i32_0 : i32, i32
  }
  func.func @transform_3(%arg0: i32) -> (i32, i32, i32) {
    %c0_i32 = arith.constant 0 : i32
    %c0_i32_0 = arith.constant 0 : i32
    %c0_i32_1 = arith.constant 0 : i32
    %c0_i32_2 = arith.constant 0 : i32
    return %c0_i32, %c0_i32_0, %c0_i32_1 : i32, i32, i32
  }
  func.func @transform_4(%arg0: i32) -> (i32, i32) {
    %c0_i32 = arith.constant 0 : i32
    %c0_i32_0 = arith.constant 0 : i32
    %c0_i32_1 = arith.constant 0 : i32
    return %c0_i32, %c0_i32_0 : i32, i32
  }
  func.func @transform_5(%arg0: i32) -> (i32, i32) {
    %c0_i32 = arith.constant 0 : i32
    %c0_i32_0 = arith.constant 0 : i32
    %c0_i32_1 = arith.constant 0 : i32
    return %c0_i32, %c0_i32_0 : i32, i32
  }
  func.func @transform_6(%arg0: i32) -> (i32, i32) {
    %c0_i32 = arith.constant 0 : i32
    %c0_i32_0 = arith.constant 0 : i32
    %c0_i32_1 = arith.constant 0 : i32
    return %c0_i32, %c0_i32_0 : i32, i32
  }
  func.func @transform_7(%arg0: i32) -> (i32, i32) {
    %c0_i32 = arith.constant 0 : i32
    %c0_i32_0 = arith.constant 0 : i32
    %c0_i32_1 = arith.constant 0 : i32
    return %c0_i32, %c0_i32_0 : i32, i32
  }
  func.func @transform_8(%arg0: i32) -> (i32, i32) {
    %c0_i32 = arith.constant 0 : i32
    %c0_i32_0 = arith.constant 0 : i32
    %c0_i32_1 = arith.constant 0 : i32
    return %c0_i32, %c0_i32_0 : i32, i32
  }
  func.func @transform_9(%arg0: i32) -> (i32, i32) {
    %c0_i32 = arith.constant 0 : i32
    %c0_i32_0 = arith.constant 0 : i32
    %c0_i32_1 = arith.constant 0 : i32
    return %c0_i32, %c0_i32_0 : i32, i32
  }
  func.func @transform_10(%arg0: i32) -> (i32, i32) {
    %c0_i32 = arith.constant 0 : i32
    %c0_i32_0 = arith.constant 0 : i32
    %c0_i32_1 = arith.constant 0 : i32
    return %c0_i32, %c0_i32_0 : i32, i32
  }
  func.func @transform_11(%arg0: i32) -> (i32, i32) {
    %c0_i32 = arith.constant 0 : i32
    %c0_i32_0 = arith.constant 0 : i32
    return %arg0, %c0_i32 : i32, i32
  }
}

</mosaic_0001>

<llo_original>
// kernel: forward.1
$region0: #{forward.1}
  #allocation0 [shape = 'u32[]', space=smem, size = 0x4, offset = 0x4, fixed_abs, tag = 'smem constant byte address 0x4 - core index']
  #allocation1 [shape = 'u32[144,128]{1,0:T(1,128)}', space=vmem, size = 0x12000, scoped, tag = 'internal scratch']
  #allocation2 [shape = 'f32[40,60]{1,0:T(8,128)}', space=vmem, size = 0x5000, scoped, tag = 'scratch operand']
  #allocation3 [shape = 'f32[34,90]{1,0:T(8,128)}', space=vmem, size = 0x5000, scoped, tag = 'scratch operand']
  #allocation4 [shape = 'f32[24,90]{1,0:T(8,128)}', space=vmem, size = 0x3000, scoped, tag = 'scratch operand']
  #allocation5 [shape = 'f32[20,128]{1,0:T(8,128)}', space=vmem, size = 0x3000, scoped, tag = 'scratch operand']
  #allocation6 [shape = 'f32[2,1024]{1,0:T(2,128)}', space=vmem, size = 0x2000, scoped, tag = 'scratch operand']
  %s0 = inlined_call_operand.vmem [shape: f32[2,16,48], index: 0, kind: input, shape index: {}]
  %s1 = inlined_call_operand.vmem [shape: bf16[7,60,96], index: 1, kind: input, shape index: {}]
  %s2 = inlined_call_operand.vmem [shape: f32[1,96], index: 2, kind: input, shape index: {}]
  %s3 = inlined_call_operand.vmem [shape: bf16[5,90,128], index: 3, kind: input, shape index: {}]
  %s4 = inlined_call_operand.vmem [shape: f32[1,128], index: 4, kind: input, shape index: {}]
  %s5 = inlined_call_operand.vmem [shape: bf16[1024,64], index: 5, kind: input, shape index: {}]
  %s6 = inlined_call_operand.vmem [shape: f32[1,64], index: 6, kind: input, shape index: {}]
  %s7 = inlined_call_operand.vmem [shape: bf16[64,16], index: 7, kind: input, shape index: {}]
  %s8 = inlined_call_operand.vmem [shape: f32[1,16], index: 8, kind: input, shape index: {}]
  %s9 = inlined_call_operand.vmem [shape: bf16[16,10], index: 9, kind: input, shape index: {}]
  %s10 = inlined_call_operand.vmem [shape: f32[1,10], index: 10, kind: input, shape index: {}]
  %s11 = inlined_call_operand.hbm [shape: f32[2,10], index: 11, kind: output, shape index: {}]
  %s12 = sld [smem:[#allocation0]]
  $region54: #{forward.1} parent=0
    _
  %s14 = ssub.s32 1, %s12
  %s15 = scalar_select 0, %s14, %s12
  $region1: #{forward.1} parent=0
    #allocation7 [shape = 'u8[1024]{0}', space=vmem, size = 0x400, scoped, tag = 'output window, operand 0, single buffered']
    #allocation8 [shape = 's32[1]{0}', space=sflag, size = 0x4, scoped, tag = 'scoped memory for forward.1']
    %16 = vsyncpa [#allocation8], 0
    // Predicated region
    $region2: #{forward.1} parent=1 // pred_check
      _
    $region3: #{forward.1} parent=1 // pred_check_branch
      %18 = sbr.rel (0) target = $region5
    $region4: #{forward.1} parent=1 // pred_region
      _
    $region5: #{forward.1} parent=1 // pred_fallthru
      _
    // Predicated region
    $region6: #{forward.1} parent=1 // pred_check
      _
    $region7: #{forward.1} parent=1 // pred_check_branch
      %20 = sbr.rel (0) target = $region9
    $region8: #{forward.1} parent=1 // pred_region
      _
    $region9: #{forward.1} parent=1 // pred_fallthru
      _
    // Predicated region
    $region10: #{forward.1} parent=1 // pred_check
      _
    $region11: #{forward.1} parent=1 // pred_check_branch
      %22 = sbr.rel (0) target = $region13
    $region12: #{forward.1} parent=1 // pred_region
      _
    $region13: #{forward.1} parent=1 // pred_fallthru
      _
    // Predicated region
    $region14: #{forward.1} parent=1 // pred_check
      _
    $region15: #{forward.1} parent=1 // pred_check_branch
      %24 = sbr.rel (0) target = $region17
    $region16: #{forward.1} parent=1 // pred_region
      _
    $region17: #{forward.1} parent=1 // pred_fallthru
      _
    // Predicated region
    $region18: #{forward.1} parent=1 // pred_check
      _
    $region19: #{forward.1} parent=1 // pred_check_branch
      %26 = sbr.rel (0) target = $region21
    $region20: #{forward.1} parent=1 // pred_region
      _
    $region21: #{forward.1} parent=1 // pred_fallthru
      _
    // Predicated region
    $region22: #{forward.1} parent=1 // pred_check
      _
    $region23: #{forward.1} parent=1 // pred_check_branch
      %28 = sbr.rel (0) target = $region25
    $region24: #{forward.1} parent=1 // pred_region
      _
    $region25: #{forward.1} parent=1 // pred_fallthru
      _
    // Predicated region
    $region26: #{forward.1} parent=1 // pred_check
      _
    $region27: #{forward.1} parent=1 // pred_check_branch
      %30 = sbr.rel (0) target = $region29
    $region28: #{forward.1} parent=1 // pred_region
      _
    $region29: #{forward.1} parent=1 // pred_fallthru
      _
    // Predicated region
    $region30: #{forward.1} parent=1 // pred_check
      _
    $region31: #{forward.1} parent=1 // pred_check_branch
      %32 = sbr.rel (0) target = $region33
    $region32: #{forward.1} parent=1 // pred_region
      _
    $region33: #{forward.1} parent=1 // pred_fallthru
      _
    // Predicated region
    $region34: #{forward.1} parent=1 // pred_check
      _
    $region35: #{forward.1} parent=1 // pred_check_branch
      %34 = sbr.rel (0) target = $region37
    $region36: #{forward.1} parent=1 // pred_region
      _
    $region37: #{forward.1} parent=1 // pred_fallthru
      _
    // Predicated region
    $region38: #{forward.1} parent=1 // pred_check
      _
    $region39: #{forward.1} parent=1 // pred_check_branch
      %36 = sbr.rel (0) target = $region41
    $region40: #{forward.1} parent=1 // pred_region
      _
    $region41: #{forward.1} parent=1 // pred_fallthru
      _
    // Predicated region
    $region42: #{forward.1} parent=1 // pred_check
      _
    $region43: #{forward.1} parent=1 // pred_check_branch
      %38 = sbr.rel (0) target = $region45
    $region44: #{forward.1} parent=1 // pred_region
      _
    $region45: #{forward.1} parent=1 // pred_fallthru
      _
    %vm40 = vcmask 490496
    %41 = vst.msk [vmem:[#allocation2] sm:$0xff] %vm40, 0.0
    %42 = vst.msk [vmem:[#allocation2 + $0x8] sm:$0xff] %vm40, 0.0
    %43 = vst.msk [vmem:[#allocation2 + $0x10] sm:$0xff] %vm40, 0.0
    %44 = vst.msk [vmem:[#allocation2 + $0x18] sm:$0xff] %vm40, 0.0
    %45 = vst.msk [vmem:[#allocation2 + $0x20] sm:$0xff] %vm40, 0.0
    %v46 = vld [vmem:[%s0] sm:$0xff]
    %v47 = vld [vmem:[%s0 + $0x8] sm:$0xff]
    %50 = vrot.lane.b32.xlu0 %v46, 6
    %v51 = vpop.permute.xlu0 %50
    %52 = vrot.lane.b32.xlu0 %v47, 6
    %v53 = vpop.permute.xlu0 %52
    %vm56 = vcmask 441392
    %57 = vst.msk [vmem:[#allocation2 + $0x2] sm:$0xff] %vm56, %v51
    %58 = vst.msk [vmem:[#allocation2 + $0xa] sm:$0xff] %vm56, %v53
    %s59 = scalar_lea.vmem %s0, 16
    %v60 = vld [vmem:[%s59] sm:$0xff]
    %v61 = vld [vmem:[%s59 + $0x8] sm:$0xff]
    %64 = vrot.lane.b32.xlu0 %v60, 6
    %v65 = vpop.permute.xlu0 %64
    %66 = vrot.lane.b32.xlu0 %v61, 6
    %v67 = vpop.permute.xlu0 %66
    %70 = vst.msk [vmem:[#allocation2 + $0x16] sm:$0xff] %vm56, %v65
    %71 = vst.msk [vmem:[#allocation2 + $0x1e] sm:$0xff] %vm56, %v67
    %v72 = vld [vmem:[#allocation2] sm:$0xff]
    %v73 = vld [vmem:[#allocation2 + $0x8] sm:$0xff]
    %v74 = vld [vmem:[#allocation2 + $0x10] sm:$0xff]
    %v75 = vld [vmem:[#allocation2 + $0x18] sm:$0xff]
    %v76 = vld [vmem:[#allocation2 + $0x20] sm:$0x3]
    %v77 = vpack.c.bf16 %v73, %v72
    %v78 = vpack.c.bf16 %v75, %v74
    %v79 = vpack.c.bf16 %v76, %v76
    %v80 = vld [vmem:[%s1] sm:$0xf]
    %v81 = vld [vmem:[%s1 + $0x4] sm:$0xf]
    %v82 = vld [vmem:[%s1 + $0x8] sm:$0xf]
    %v83 = vld [vmem:[%s1 + $0xc] sm:$0xf]
    %v84 = vld [vmem:[%s1 + $0x10] sm:$0xf]
    %v85 = vld [vmem:[%s1 + $0x14] sm:$0xf]
    %v86 = vld [vmem:[%s1 + $0x18] sm:$0xf]
    %v87 = vld [vmem:[%s1 + $0x1c] sm:$0x3]
    %v88 = vld [vmem:[#allocation2 + $0x1] sm:$0xff]
    %v89 = vld [vmem:[#allocation2 + $0x9] sm:$0xff]
    %v90 = vld [vmem:[#allocation2 + $0x11] sm:$0xff]
    %v91 = vld [vmem:[#allocation2 + $0x19] sm:$0xff]
    %v92 = vld [vmem:[#allocation2 + $0x21] sm:$0x3]
    %v93 = vpack.c.bf16 %v89, %v88
    %v94 = vpack.c.bf16 %v91, %v90
    %v95 = vpack.c.bf16 %v92, %v92
    %s96 = scalar_lea.vmem %s1, 32
    %v97 = vld [vmem:[%s96] sm:$0xf]
    %v98 = vld [vmem:[%s96 + $0x4] sm:$0xf]
    %v99 = vld [vmem:[%s96 + $0x8] sm:$0xf]
    %v100 = vld [vmem:[%s96 + $0xc] sm:$0xf]
    %v101 = vld [vmem:[%s96 + $0x10] sm:$0xf]
    %v102 = vld [vmem:[%s96 + $0x14] sm:$0xf]
    %v103 = vld [vmem:[%s96 + $0x18] sm:$0xf]
    %v104 = vld [vmem:[%s96 + $0x1c] sm:$0x3]
    %v113 = vunpack.c.l.b16 %v97
    %v114 = vunpack.c.l.b16 %v98
    %v115 = vunpack.c.l.b16 %v99
    %v116 = vunpack.c.l.b16 %v100
    %v117 = vunpack.c.l.b16 %v101
    %v118 = vunpack.c.l.b16 %v102
    %v119 = vunpack.c.l.b16 %v103
    %v120 = vunpack.c.l.b16 %v104
    %v121 = vpack.c.b16 %v114, %v113
    %v122 = vpack.c.b16 %v116, %v115
    %v123 = vpack.c.b16 %v118, %v117
    %v124 = vpack.c.b16 %v120, %v119
    %v129 = vsel %vm40, %v93, 0
    %v132 = vsel %vm40, %v94, 0
    %v135 = vsel %vm40, %v95, 0
    %vm137 = vcmask 1045504
    %v139 = vsel %vm137, %v124, 0
    %141 = vmatprep.subr.bf16.mxu0 0
    %142 = vmatpush1.bf16.msra.mxu0 %v121
    %143 = vmatprep.subr.bf16.mxu0 0
    %144 = vmatpush1.bf16.msra.mxu0 %v122
    %145 = vmatprep.subr.bf16.mxu0 0
    %146 = vmatpush1.bf16.msra.mxu0 %v123
    %147 = vmatprep.subr.bf16.mxu0 0
    %148 = vmatpush1.bf16.msra.mxu0 %v139
    %149 = vmatprep.subr.bf16.mxu0 0
    %150 = vmatpush1.bf16.msra.mxu0 0
    %151 = vmatprep.subr.bf16.mxu0 0
    %152 = vmatpush1.bf16.msra.mxu0 0
    %153 = vmatprep.subr.bf16.mxu0 0
    %154 = vmatpush1.bf16.msra.mxu0 0
    %155 = vmatprep.subr.bf16.mxu0 0
    %156 = vmatpush1.bf16.msra.mxu0 0
    %157 = vmatprep.subr.bf16.mxu0 0
    %158 = vmatpush1.bf16.msra.mxu0 0
    %159 = vmatprep.subr.bf16.mxu0 0
    %160 = vmatpush1.bf16.msra.mxu0 0
    %161 = vmatprep.subr.bf16.mxu0 0
    %162 = vmatpush1.bf16.msra.mxu0 0
    %163 = vmatprep.subr.bf16.mxu0 0
    %164 = vmatpush1.bf16.msra.mxu0 0
    %165 = vmatprep.subr.bf16.mxu0 0
    %166 = vmatpush1.bf16.msra.mxu0 0
    %167 = vmatprep.subr.bf16.mxu0 0
    %168 = vmatpush1.bf16.msra.mxu0 0
    %169 = vmatprep.subr.bf16.mxu0 0
    %170 = vmatpush1.bf16.msra.mxu0 0
    %171 = vmatprep.subr.bf16.mxu0 0
    %172 = vmatpush1.bf16.msra.mxu0 0
    %173 = vmatprep.mubr.bf16.mxu0 0
    %174 = vmatmul.mubr.bf16.gmra.mrb[0].mxu0 %v129
    %v175 = vpop.f32.mrb[0].mxu0
    %v176 = vadd.f32 0.0, %v175
    %v177 = vpop.f32.mrb[0].mxu0
    %v178 = vpop.f32.mrb[0].mxu0
    %v179 = vadd.f32 0.0, %v178
    %v180 = vpop.f32.mrb[0].mxu0
    %181 = vmatprep.mubr.bf16.mxu0 0
    %182 = vmatmul.mubr.bf16.gmra.mrb[0].mxu0 %v132
    %v183 = vpop.f32.mrb[0].mxu0
    %v184 = vadd.f32 0.0, %v183
    %v185 = vpop.f32.mrb[0].mxu0
    %v186 = vpop.f32.mrb[0].mxu0
    %v187 = vadd.f32 0.0, %v186
    %v188 = vpop.f32.mrb[0].mxu0
    %189 = vmatprep.mubr.bf16.mxu0 0
    %190 = vmatmul.mubr.bf16.gmra.mrb[0].mxu0 %v135
    %v191 = vpop.f32.mrb[0].mxu0
    %v192 = vadd.f32 0.0, %v191
    %v193 = vpop.f32.mrb[0].mxu0
    %v194 = vpop.f32.mrb[0].mxu0
    %v195 = vpop.f32.mrb[0].mxu0
    %196 = vdwg.mxu0
    %v205 = vunpack.c.l.b16 %v80
    %v206 = vunpack.c.l.b16 %v81
    %v207 = vunpack.c.l.b16 %v82
    %v208 = vunpack.c.l.b16 %v83
    %v209 = vunpack.c.l.b16 %v84
    %v210 = vunpack.c.l.b16 %v85
    %v211 = vunpack.c.l.b16 %v86
    %v212 = vunpack.c.l.b16 %v87
    %v213 = vpack.c.b16 %v206, %v205
    %v214 = vpack.c.b16 %v208, %v207
    %v215 = vpack.c.b16 %v210, %v209
    %v216 = vpack.c.b16 %v212, %v211
    %v221 = vsel %vm40, %v77, 0
    %v224 = vsel %vm40, %v78, 0
    %v227 = vsel %vm40, %v79, 0
    %v230 = vsel %vm137, %v216, 0
    %232 = vmatprep.subr.bf16.mxu0 0
    %233 = vmatpush1.bf16.msra.mxu0 %v213
    %234 = vmatprep.subr.bf16.mxu0 0
    %235 = vmatpush1.bf16.msra.mxu0 %v214
    %236 = vmatprep.subr.bf16.mxu0 0
    %237 = vmatpush1.bf16.msra.mxu0 %v215
    %238 = vmatprep.subr.bf16.mxu0 0
    %239 = vmatpush1.bf16.msra.mxu0 %v230
    %240 = vmatprep.subr.bf16.mxu0 0
    %241 = vmatpush1.bf16.msra.mxu0 0
    %242 = vmatprep.subr.bf16.mxu0 0
    %243 = vmatpush1.bf16.msra.mxu0 0
    %244 = vmatprep.subr.bf16.mxu0 0
    %245 = vmatpush1.bf16.msra.mxu0 0
    %246 = vmatprep.subr.bf16.mxu0 0
    %247 = vmatpush1.bf16.msra.mxu0 0
    %248 = vmatprep.subr.bf16.mxu0 0
    %249 = vmatpush1.bf16.msra.mxu0 0
    %250 = vmatprep.subr.bf16.mxu0 0
    %251 = vmatpush1.bf16.msra.mxu0 0
    %252 = vmatprep.subr.bf16.mxu0 0
    %253 = vmatpush1.bf16.msra.mxu0 0
    %254 = vmatprep.subr.bf16.mxu0 0
    %255 = vmatpush1.bf16.msra.mxu0 0
    %256 = vmatprep.subr.bf16.mxu0 0
    %257 = vmatpush1.bf16.msra.mxu0 0
    %258 = vmatprep.subr.bf16.mxu0 0
    %259 = vmatpush1.bf16.msra.mxu0 0
    %260 = vmatprep.subr.bf16.mxu0 0
    %261 = vmatpush1.bf16.msra.mxu0 0
    %262 = vmatprep.subr.bf16.mxu0 0
    %263 = vmatpush1.bf16.msra.mxu0 0
    %264 = vmatprep.mubr.bf16.mxu0 0
    %265 = vmatmul.mubr.bf16.gmra.mrb[0].mxu0 %v221
    %v266 = vpop.f32.mrb[0].mxu0
    %v267 = vadd.f32 %v176, %v266
    %v268 = vpop.f32.mrb[0].mxu0
    %v269 = vpop.f32.mrb[0].mxu0
    %v270 = vadd.f32 %v179, %v269
    %v271 = vpop.f32.mrb[0].mxu0
    %272 = vmatprep.mubr.bf16.mxu0 0
    %273 = vmatmul.mubr.bf16.gmra.mrb[0].mxu0 %v224
    %v274 = vpop.f32.mrb[0].mxu0
    %v275 = vadd.f32 %v184, %v274
    %v276 = vpop.f32.mrb[0].mxu0
    %v277 = vpop.f32.mrb[0].mxu0
    %v278 = vadd.f32 %v187, %v277
    %v279 = vpop.f32.mrb[0].mxu0
    %280 = vmatprep.mubr.bf16.mxu0 0
    %281 = vmatmul.mubr.bf16.gmra.mrb[0].mxu0 %v227
    %v282 = vpop.f32.mrb[0].mxu0
    %v283 = vadd.f32 %v192, %v282
    %v284 = vpop.f32.mrb[0].mxu0
    %v285 = vpop.f32.mrb[0].mxu0
    %v286 = vpop.f32.mrb[0].mxu0
    %287 = vdwg.mxu0
    %v288 = vld [vmem:[#allocation2 + $0x2] sm:$0xff]
    %v289 = vld [vmem:[#allocation2 + $0xa] sm:$0xff]
    %v290 = vld [vmem:[#allocation2 + $0x12] sm:$0xff]
    %v291 = vld [vmem:[#allocation2 + $0x1a] sm:$0xff]
    %v292 = vld [vmem:[#allocation2 + $0x22] sm:$0x3]
    %v293 = vpack.c.bf16 %v289, %v288
    %v294 = vpack.c.bf16 %v291, %v290
    %v295 = vpack.c.bf16 %v292, %v292
    %s296 = scalar_lea.vmem %s1, 64
    %v297 = vld [vmem:[%s296] sm:$0xf]
    %v298 = vld [vmem:[%s296 + $0x4] sm:$0xf]
    %v299 = vld [vmem:[%s296 + $0x8] sm:$0xf]
    %v300 = vld [vmem:[%s296 + $0xc] sm:$0xf]
    %v301 = vld [vmem:[%s296 + $0x10] sm:$0xf]
    %v302 = vld [vmem:[%s296 + $0x14] sm:$0xf]
    %v303 = vld [vmem:[%s296 + $0x18] sm:$0xf]
    %v304 = vld [vmem:[%s296 + $0x1c] sm:$0x3]
    %v313 = vunpack.c.l.b16 %v297
    %v314 = vunpack.c.l.b16 %v298
    %v315 = vunpack.c.l.b16 %v299
    %v316 = vunpack.c.l.b16 %v300
    %v317 = vunpack.c.l.b16 %v301
    %v318 = vunpack.c.l.b16 %v302
    %v319 = vunpack.c.l.b16 %v303
    %v320 = vunpack.c.l.b16 %v304
    %v321 = vpack.c.b16 %v314, %v313
    %v322 = vpack.c.b16 %v316, %v315
    %v323 = vpack.c.b16 %v318, %v317
    %v324 = vpack.c.b16 %v320, %v319
    %v329 = vsel %vm40, %v293, 0
    %v332 = vsel %vm40, %v294, 0
    %v335 = vsel %vm40, %v295, 0
    %v338 = vsel %vm137, %v324, 0
    %340 = vmatprep.subr.bf16.mxu0 0
    %341 = vmatpush1.bf16.msra.mxu0 %v321
    %342 = vmatprep.subr.bf16.mxu0 0
    %343 = vmatpush1.bf16.msra.mxu0 %v322
    %344 = vmatprep.subr.bf16.mxu0 0
    %345 = vmatpush1.bf16.msra.mxu0 %v323
    %346 = vmatprep.subr.bf16.mxu0 0
    %347 = vmatpush1.bf16.msra.mxu0 %v338
    %348 = vmatprep.subr.bf16.mxu0 0
    %349 = vmatpush1.bf16.msra.mxu0 0
    %350 = vmatprep.subr.bf16.mxu0 0
    %351 = vmatpush1.bf16.msra.mxu0 0
    %352 = vmatprep.subr.bf16.mxu0 0
    %353 = vmatpush1.bf16.msra.mxu0 0
    %354 = vmatprep.subr.bf16.mxu0 0
    %355 = vmatpush1.bf16.msra.mxu0 0
    %356 = vmatprep.subr.bf16.mxu0 0
    %357 = vmatpush1.bf16.msra.mxu0 0
    %358 = vmatprep.subr.bf16.mxu0 0
    %359 = vmatpush1.bf16.msra.mxu0 0
    %360 = vmatprep.subr.bf16.mxu0 0
    %361 = vmatpush1.bf16.msra.mxu0 0
    %362 = vmatprep.subr.bf16.mxu0 0
    %363 = vmatpush1.bf16.msra.mxu0 0
    %364 = vmatprep.subr.bf16.mxu0 0
    %365 = vmatpush1.bf16.msra.mxu0 0
    %366 = vmatprep.subr.bf16.mxu0 0
    %367 = vmatpush1.bf16.msra.mxu0 0
    %368 = vmatprep.subr.bf16.mxu0 0
    %369 = vmatpush1.bf16.msra.mxu0 0
    %370 = vmatprep.subr.bf16.mxu0 0
    %371 = vmatpush1.bf16.msra.mxu0 0
    %372 = vmatprep.mubr.bf16.mxu0 0
    %373 = vmatmul.mubr.bf16.gmra.mrb[0].mxu0 %v329
    %v374 = vpop.f32.mrb[0].mxu0
    %v375 = vadd.f32 0.0, %v374
    %v376 = vpop.f32.mrb[0].mxu0
    %v377 = vpop.f32.mrb[0].mxu0
    %v378 = vadd.f32 0.0, %v377
    %v379 = vpop.f32.mrb[0].mxu0
    %380 = vmatprep.mubr.bf16.mxu0 0
    %381 = vmatmul.mubr.bf16.gmra.mrb[0].mxu0 %v332
    %v382 = vpop.f32.mrb[0].mxu0
    %v383 = vadd.f32 0.0, %v382
    %v384 = vpop.f32.mrb[0].mxu0
    %v385 = vpop.f32.mrb[0].mxu0
    %v386 = vadd.f32 0.0, %v385
    %v387 = vpop.f32.mrb[0].mxu0
    %388 = vmatprep.mubr.bf16.mxu0 0
    %389 = vmatmul.mubr.bf16.gmra.mrb[0].mxu0 %v335
    %v390 = vpop.f32.mrb[0].mxu0
    %v391 = vadd.f32 0.0, %v390
    %v392 = vpop.f32.mrb[0].mxu0
    %v393 = vpop.f32.mrb[0].mxu0
    %v394 = vpop.f32.mrb[0].mxu0
    %395 = vdwg.mxu0
    %v396 = vadd.f32 %v267, %v375
    %v397 = vadd.f32 %v270, %v378
    %v398 = vadd.f32 %v275, %v383
    %v399 = vadd.f32 %v278, %v386
    %v400 = vadd.f32 %v283, %v391
    %v401 = vld [vmem:[#allocation2 + $0x3] sm:$0xff]
    %v402 = vld [vmem:[#allocation2 + $0xb] sm:$0xff]
    %v403 = vld [vmem:[#allocation2 + $0x13] sm:$0xff]
    %v404 = vld [vmem:[#allocation2 + $0x1b] sm:$0xff]
    %v405 = vld [vmem:[#allocation2 + $0x23] sm:$0x3]
    %v406 = vpack.c.bf16 %v402, %v401
    %v407 = vpack.c.bf16 %v404, %v403
    %v408 = vpack.c.bf16 %v405, %v405
    %s409 = scalar_lea.vmem %s1, 96
    %v410 = vld [vmem:[%s409] sm:$0xf]
    %v411 = vld [vmem:[%s409 + $0x4] sm:$0xf]
    %v412 = vld [vmem:[%s409 + $0x8] sm:$0xf]
    %v413 = vld [vmem:[%s409 + $0xc] sm:$0xf]
    %v414 = vld [vmem:[%s409 + $0x10] sm:$0xf]
    %v415 = vld [vmem:[%s409 + $0x14] sm:$0xf]
    %v416 = vld [vmem:[%s409 + $0x18] sm:$0xf]
    %v417 = vld [vmem:[%s409 + $0x1c] sm:$0x3]
    %v426 = vunpack.c.l.b16 %v410
    %v427 = vunpack.c.l.b16 %v411
    %v428 = vunpack.c.l.b16 %v412
    %v429 = vunpack.c.l.b16 %v413
    %v430 = vunpack.c.l.b16 %v414
    %v431 = vunpack.c.l.b16 %v415
    %v432 = vunpack.c.l.b16 %v416
    %v433 = vunpack.c.l.b16 %v417
    %v434 = vpack.c.b16 %v427, %v426
    %v435 = vpack.c.b16 %v429, %v428
    %v436 = vpack.c.b16 %v431, %v430
    %v437 = vpack.c.b16 %v433, %v432
    %v442 = vsel %vm40, %v406, 0
    %v445 = vsel %vm40, %v407, 0
    %v448 = vsel %vm40, %v408, 0
    %v451 = vsel %vm137, %v437, 0
    %453 = vmatprep.subr.bf16.mxu0 0
    %454 = vmatpush1.bf16.msra.mxu0 %v434
    %455 = vmatprep.subr.bf16.mxu0 0
    %456 = vmatpush1.bf16.msra.mxu0 %v435
    %457 = vmatprep.subr.bf16.mxu0 0
    %458 = vmatpush1.bf16.msra.mxu0 %v436
    %459 = vmatprep.subr.bf16.mxu0 0
    %460 = vmatpush1.bf16.msra.mxu0 %v451
    %461 = vmatprep.subr.bf16.mxu0 0
    %462 = vmatpush1.bf16.msra.mxu0 0
    %463 = vmatprep.subr.bf16.mxu0 0
    %464 = vmatpush1.bf16.msra.mxu0 0
    %465 = vmatprep.subr.bf16.mxu0 0
    %466 = vmatpush1.bf16.msra.mxu0 0
    %467 = vmatprep.subr.bf16.mxu0 0
    %468 = vmatpush1.bf16.msra.mxu0 0
    %469 = vmatprep.subr.bf16.mxu0 0
    %470 = vmatpush1.bf16.msra.mxu0 0
    %471 = vmatprep.subr.bf16.mxu0 0
    %472 = vmatpush1.bf16.msra.mxu0 0
    %473 = vmatprep.subr.bf16.mxu0 0
    %474 = vmatpush1.bf16.msra.mxu0 0
    %475 = vmatprep.subr.bf16.mxu0 0
    %476 = vmatpush1.bf16.msra.mxu0 0
    %477 = vmatprep.subr.bf16.mxu0 0
    %478 = vmatpush1.bf16.msra.mxu0 0
    %479 = vmatprep.subr.bf16.mxu0 0
    %480 = vmatpush1.bf16.msra.mxu0 0
    %481 = vmatprep.subr.bf16.mxu0 0
    %482 = vmatpush1.bf16.msra.mxu0 0
    %483 = vmatprep.subr.bf16.mxu0 0
    %484 = vmatpush1.bf16.msra.mxu0 0
    %485 = vmatprep.mubr.bf16.mxu0 0
    %486 = vmatmul.mubr.bf16.gmra.mrb[0].mxu0 %v442
    %v487 = vpop.f32.mrb[0].mxu0
    %v488 = vadd.f32 0.0, %v487
    %v489 = vpop.f32.mrb[0].mxu0
    %v490 = vpop.f32.mrb[0].mxu0
    %v491 = vadd.f32 0.0, %v490
    %v492 = vpop.f32.mrb[0].mxu0
    %493 = vmatprep.mubr.bf16.mxu0 0
    %494 = vmatmul.mubr.bf16.gmra.mrb[0].mxu0 %v445
    %v495 = vpop.f32.mrb[0].mxu0
    %v496 = vadd.f32 0.0, %v495
    %v497 = vpop.f32.mrb[0].mxu0
    %v498 = vpop.f32.mrb[0].mxu0
    %v499 = vadd.f32 0.0, %v498
    %v500 = vpop.f32.mrb[0].mxu0
    %501 = vmatprep.mubr.bf16.mxu0 0
    %502 = vmatmul.mubr.bf16.gmra.mrb[0].mxu0 %v448
    %v503 = vpop.f32.mrb[0].mxu0
    %v504 = vadd.f32 0.0, %v503
    %v505 = vpop.f32.mrb[0].mxu0
    %v506 = vpop.f32.mrb[0].mxu0
    %v507 = vpop.f32.mrb[0].mxu0
    %508 = vdwg.mxu0
    %v509 = vadd.f32 %v396, %v488
    %v510 = vadd.f32 %v397, %v491
    %v511 = vadd.f32 %v398, %v496
    %v512 = vadd.f32 %v399, %v499
    %v513 = vadd.f32 %v400, %v504
    %v514 = vld [vmem:[#allocation2 + $0x4] sm:$0xff]
    %v515 = vld [vmem:[#allocation2 + $0xc] sm:$0xff]
    %v516 = vld [vmem:[#allocation2 + $0x14] sm:$0xff]
    %v517 = vld [vmem:[#allocation2 + $0x1c] sm:$0xff]
    %v518 = vld [vmem:[#allocation2 + $0x24] sm:$0x3]
    %v519 = vpack.c.bf16 %v515, %v514
    %v520 = vpack.c.bf16 %v517, %v516
    %v521 = vpack.c.bf16 %v518, %v518
    %s522 = scalar_lea.vmem %s1, 128
    %v523 = vld [vmem:[%s522] sm:$0xf]
    %v524 = vld [vmem:[%s522 + $0x4] sm:$0xf]
    %v525 = vld [vmem:[%s522 + $0x8] sm:$0xf]
    %v526 = vld [vmem:[%s522 + $0xc] sm:$0xf]
    %v527 = vld [vmem:[%s522 + $0x10] sm:$0xf]
    %v528 = vld [vmem:[%s522 + $0x14] sm:$0xf]
    %v529 = vld [vmem:[%s522 + $0x18] sm:$0xf]
    %v530 = vld [vmem:[%s522 + $0x1c] sm:$0x3]
    %v539 = vunpack.c.l.b16 %v523
    %v540 = vunpack.c.l.b16 %v524
    %v541 = vunpack.c.l.b16 %v525
    %v542 = vunpack.c.l.b16 %v526
    %v543 = vunpack.c.l.b16 %v527
    %v544 = vunpack.c.l.b16 %v528
    %v545 = vunpack.c.l.b16 %v529
    %v546 = vunpack.c.l.b16 %v530
    %v547 = vpack.c.b16 %v540, %v539
    %v548 = vpack.c.b16 %v542, %v541
    %v549 = vpack.c.b16 %v544, %v543
    %v550 = vpack.c.b16 %v546, %v545
    %v555 = vsel %vm40, %v519, 0
    %v558 = vsel %vm40, %v520, 0
    %v561 = vsel %vm40, %v521, 0
    %v564 = vsel %vm137, %v550, 0
    %566 = vmatprep.subr.bf16.mxu0 0
    %567 = vmatpush1.bf16.msra.mxu0 %v547
    %568 = vmatprep.subr.bf16.mxu0 0
    %569 = vmatpush1.bf16.msra.mxu0 %v548
    %570 = vmatprep.subr.bf16.mxu0 0
    %571 = vmatpush1.bf16.msra.mxu0 %v549
    %572 = vmatprep.subr.bf16.mxu0 0
    %573 = vmatpush1.bf16.msra.mxu0 %v564
    %574 = vmatprep.subr.bf16.mxu0 0
    %575 = vmatpush1.bf16.msra.mxu0 0
    %576 = vmatprep.subr.bf16.mxu0 0
    %577 = vmatpush1.bf16.msra.mxu0 0
    %578 = vmatprep.subr.bf16.mxu0 0
    %579 = vmatpush1.bf16.msra.mxu0 0
    %580 = vmatprep.subr.bf16.mxu0 0
    %581 = vmatpush1.bf16.msra.mxu0 0
    %582 = vmatprep.subr.bf16.mxu0 0
    %583 = vmatpush1.bf16.msra.mxu0 0
    %584 = vmatprep.subr.bf16.mxu0 0
    %585 = vmatpush1.bf16.msra.mxu0 0
    %586 = vmatprep.subr.bf16.mxu0 0
    %587 = vmatpush1.bf16.msra.mxu0 0
    %588 = vmatprep.subr.bf16.mxu0 0
    %589 = vmatpush1.bf16.msra.mxu0 0
    %590 = vmatprep.subr.bf16.mxu0 0
    %591 = vmatpush1.bf16.msra.mxu0 0
    %592 = vmatprep.subr.bf16.mxu0 0
    %593 = vmatpush1.bf16.msra.mxu0 0
    %594 = vmatprep.subr.bf16.mxu0 0
    %595 = vmatpush1.bf16.msra.mxu0 0
    %596 = vmatprep.subr.bf16.mxu0 0
    %597 = vmatpush1.bf16.msra.mxu0 0
    %598 = vmatprep.mubr.bf16.mxu0 0
    %599 = vmatmul.mubr.bf16.gmra.mrb[0].mxu0 %v555
    %v600 = vpop.f32.mrb[0].mxu0
    %v601 = vadd.f32 0.0, %v600
    %v602 = vpop.f32.mrb[0].mxu0
    %v603 = vpop.f32.mrb[0].mxu0
    %v604 = vadd.f32 0.0, %v603
    %v605 = vpop.f32.mrb[0].mxu0
    %606 = vmatprep.mubr.bf16.mxu0 0
    %607 = vmatmul.mubr.bf16.gmra.mrb[0].mxu0 %v558
    %v608 = vpop.f32.mrb[0].mxu0
    %v609 = vadd.f32 0.0, %v608
    %v610 = vpop.f32.mrb[0].mxu0
    %v611 = vpop.f32.mrb[0].mxu0
    %v612 = vadd.f32 0.0, %v611
    %v613 = vpop.f32.mrb[0].mxu0
    %614 = vmatprep.mubr.bf16.mxu0 0
    %615 = vmatmul.mubr.bf16.gmra.mrb[0].mxu0 %v561
    %v616 = vpop.f32.mrb[0].mxu0
    %v617 = vadd.f32 0.0, %v616
    %v618 = vpop.f32.mrb[0].mxu0
    %v619 = vpop.f32.mrb[0].mxu0
    %v620 = vpop.f32.mrb[0].mxu0
    %621 = vdwg.mxu0
    %v622 = vadd.f32 %v509, %v601
    %v623 = vadd.f32 %v510, %v604
    %v624 = vadd.f32 %v511, %v609
    %v625 = vadd.f32 %v512, %v612
    %v626 = vadd.f32 %v513, %v617
    %v627 = vld [vmem:[#allocation2 + $0x5] sm:$0xff]
    %v628 = vld [vmem:[#allocation2 + $0xd] sm:$0xff]
    %v629 = vld [vmem:[#allocation2 + $0x15] sm:$0xff]
    %v630 = vld [vmem:[#allocation2 + $0x1d] sm:$0xff]
    %v631 = vld [vmem:[#allocation2 + $0x25] sm:$0x3]
    %v632 = vpack.c.bf16 %v628, %v627
    %v633 = vpack.c.bf16 %v630, %v629
    %v634 = vpack.c.bf16 %v631, %v631
    %s635 = scalar_lea.vmem %s1, 160
    %v636 = vld [vmem:[%s635] sm:$0xf]
    %v637 = vld [vmem:[%s635 + $0x4] sm:$0xf]
    %v638 = vld [vmem:[%s635 + $0x8] sm:$0xf]
    %v639 = vld [vmem:[%s635 + $0xc] sm:$0xf]
    %v640 = vld [vmem:[%s635 + $0x10] sm:$0xf]
    %v641 = vld [vmem:[%s635 + $0x14] sm:$0xf]
    %v642 = vld [vmem:[%s635 + $0x18] sm:$0xf]
    %v643 = vld [vmem:[%s635 + $0x1c] sm:$0x3]
    %v652 = vunpack.c.l.b16 %v636
    %v653 = vunpack.c.l.b16 %v637
    %v654 = vunpack.c.l.b16 %v638
    %v655 = vunpack.c.l.b16 %v639
    %v656 = vunpack.c.l.b16 %v640
    %v657 = vunpack.c.l.b16 %v641
    %v658 = vunpack.c.l.b16 %v642
    %v659 = vunpack.c.l.b16 %v643
    %v660 = vpack.c.b16 %v653, %v652
    %v661 = vpack.c.b16 %v655, %v654
    %v662 = vpack.c.b16 %v657, %v656
    %v663 = vpack.c.b16 %v659, %v658
    %v668 = vsel %vm40, %v632, 0
    %v671 = vsel %vm40, %v633, 0
    %v674 = vsel %vm40, %v634, 0
    %v677 = vsel %vm137, %v663, 0
    %679 = vmatprep.subr.bf16.mxu0 0
    %680 = vmatpush1.bf16.msra.mxu0 %v660
    %681 = vmatprep.subr.bf16.mxu0 0
    %682 = vmatpush1.bf16.msra.mxu0 %v661
    %683 = vmatprep.subr.bf16.mxu0 0
    %684 = vmatpush1.bf16.msra.mxu0 %v662
    %685 = vmatprep.subr.bf16.mxu0 0
    %686 = vmatpush1.bf16.msra.mxu0 %v677
    %687 = vmatprep.subr.bf16.mxu0 0
    %688 = vmatpush1.bf16.msra.mxu0 0
    %689 = vmatprep.subr.bf16.mxu0 0
    %690 = vmatpush1.bf16.msra.mxu0 0
    %691 = vmatprep.subr.bf16.mxu0 0
    %692 = vmatpush1.bf16.msra.mxu0 0
    %693 = vmatprep.subr.bf16.mxu0 0
    %694 = vmatpush1.bf16.msra.mxu0 0
    %695 = vmatprep.subr.bf16.mxu0 0
    %696 = vmatpush1.bf16.msra.mxu0 0
    %697 = vmatprep.subr.bf16.mxu0 0
    %698 = vmatpush1.bf16.msra.mxu0 0
    %699 = vmatprep.subr.bf16.mxu0 0
    %700 = vmatpush1.bf16.msra.mxu0 0
    %701 = vmatprep.subr.bf16.mxu0 0
    %702 = vmatpush1.bf16.msra.mxu0 0
    %703 = vmatprep.subr.bf16.mxu0 0
    %704 = vmatpush1.bf16.msra.mxu0 0
    %705 = vmatprep.subr.bf16.mxu0 0
    %706 = vmatpush1.bf16.msra.mxu0 0
    %707 = vmatprep.subr.bf16.mxu0 0
    %708 = vmatpush1.bf16.msra.mxu0 0
    %709 = vmatprep.subr.bf16.mxu0 0
    %710 = vmatpush1.bf16.msra.mxu0 0
    %711 = vmatprep.mubr.bf16.mxu0 0
    %712 = vmatmul.mubr.bf16.gmra.mrb[0].mxu0 %v668
    %v713 = vpop.f32.mrb[0].mxu0
    %v714 = vadd.f32 0.0, %v713
    %v715 = vpop.f32.mrb[0].mxu0
    %v716 = vpop.f32.mrb[0].mxu0
    %v717 = vadd.f32 0.0, %v716
    %v718 = vpop.f32.mrb[0].mxu0
    %719 = vmatprep.mubr.bf16.mxu0 0
    %720 = vmatmul.mubr.bf16.gmra.mrb[0].mxu0 %v671
    %v721 = vpop.f32.mrb[0].mxu0
    %v722 = vadd.f32 0.0, %v721
    %v723 = vpop.f32.mrb[0].mxu0
    %v724 = vpop.f32.mrb[0].mxu0
    %v725 = vadd.f32 0.0, %v724
    %v726 = vpop.f32.mrb[0].mxu0
    %727 = vmatprep.mubr.bf16.mxu0 0
    %728 = vmatmul.mubr.bf16.gmra.mrb[0].mxu0 %v674
    %v729 = vpop.f32.mrb[0].mxu0
    %v730 = vadd.f32 0.0, %v729
    %v731 = vpop.f32.mrb[0].mxu0
    %v732 = vpop.f32.mrb[0].mxu0
    %v733 = vpop.f32.mrb[0].mxu0
    %734 = vdwg.mxu0
    %v735 = vadd.f32 %v622, %v714
    %v736 = vadd.f32 %v623, %v717
    %v737 = vadd.f32 %v624, %v722
    %v738 = vadd.f32 %v625, %v725
    %v739 = vadd.f32 %v626, %v730
    %v740 = vld [vmem:[#allocation2 + $0x6] sm:$0xff]
    %v741 = vld [vmem:[#allocation2 + $0xe] sm:$0xff]
    %v742 = vld [vmem:[#allocation2 + $0x16] sm:$0xff]
    %v743 = vld [vmem:[#allocation2 + $0x1e] sm:$0xff]
    %v744 = vld [vmem:[#allocation2 + $0x26] sm:$0x3]
    %v745 = vpack.c.bf16 %v741, %v740
    %v746 = vpack.c.bf16 %v743, %v742
    %v747 = vpack.c.bf16 %v744, %v744
    %s748 = scalar_lea.vmem %s1, 192
    %v749 = vld [vmem:[%s748] sm:$0xf]
    %v750 = vld [vmem:[%s748 + $0x4] sm:$0xf]
    %v751 = vld [vmem:[%s748 + $0x8] sm:$0xf]
    %v752 = vld [vmem:[%s748 + $0xc] sm:$0xf]
    %v753 = vld [vmem:[%s748 + $0x10] sm:$0xf]
    %v754 = vld [vmem:[%s748 + $0x14] sm:$0xf]
    %v755 = vld [vmem:[%s748 + $0x18] sm:$0xf]
    %v756 = vld [vmem:[%s748 + $0x1c] sm:$0x3]
    %v765 = vunpack.c.l.b16 %v749
    %v766 = vunpack.c.l.b16 %v750
    %v767 = vunpack.c.l.b16 %v751
    %v768 = vunpack.c.l.b16 %v752
    %v769 = vunpack.c.l.b16 %v753
    %v770 = vunpack.c.l.b16 %v754
    %v771 = vunpack.c.l.b16 %v755
    %v772 = vunpack.c.l.b16 %v756
    %v773 = vpack.c.b16 %v766, %v765
    %v774 = vpack.c.b16 %v768, %v767
    %v775 = vpack.c.b16 %v770, %v769
    %v776 = vpack.c.b16 %v772, %v771
    %v781 = vsel %vm40, %v745, 0
    %v784 = vsel %vm40, %v746, 0
    %v787 = vsel %vm40, %v747, 0
    %v790 = vsel %vm137, %v776, 0
    %792 = vmatprep.subr.bf16.mxu0 0
    %793 = vmatpush1.bf16.msra.mxu0 %v773
    %794 = vmatprep.subr.bf16.mxu0 0
    %795 = vmatpush1.bf16.msra.mxu0 %v774
    %796 = vmatprep.subr.bf16.mxu0 0
    %797 = vmatpush1.bf16.msra.mxu0 %v775
    %798 = vmatprep.subr.bf16.mxu0 0
    %799 = vmatpush1.bf16.msra.mxu0 %v790
    %800 = vmatprep.subr.bf16.mxu0 0
    %801 = vmatpush1.bf16.msra.mxu0 0
    %802 = vmatprep.subr.bf16.mxu0 0
    %803 = vmatpush1.bf16.msra.mxu0 0
    %804 = vmatprep.subr.bf16.mxu0 0
    %805 = vmatpush1.bf16.msra.mxu0 0
    %806 = vmatprep.subr.bf16.mxu0 0
    %807 = vmatpush1.bf16.msra.mxu0 0
    %808 = vmatprep.subr.bf16.mxu0 0
    %809 = vmatpush1.bf16.msra.mxu0 0
    %810 = vmatprep.subr.bf16.mxu0 0
    %811 = vmatpush1.bf16.msra.mxu0 0
    %812 = vmatprep.subr.bf16.mxu0 0
    %813 = vmatpush1.bf16.msra.mxu0 0
    %814 = vmatprep.subr.bf16.mxu0 0
    %815 = vmatpush1.bf16.msra.mxu0 0
    %816 = vmatprep.subr.bf16.mxu0 0
    %817 = vmatpush1.bf16.msra.mxu0 0
    %818 = vmatprep.subr.bf16.mxu0 0
    %819 = vmatpush1.bf16.msra.mxu0 0
    %820 = vmatprep.subr.bf16.mxu0 0
    %821 = vmatpush1.bf16.msra.mxu0 0
    %822 = vmatprep.subr.bf16.mxu0 0
    %823 = vmatpush1.bf16.msra.mxu0 0
    %824 = vmatprep.mubr.bf16.mxu0 0
    %825 = vmatmul.mubr.bf16.gmra.mrb[0].mxu0 %v781
    %v826 = vpop.f32.mrb[0].mxu0
    %v827 = vadd.f32 0.0, %v826
    %v828 = vpop.f32.mrb[0].mxu0
    %v829 = vpop.f32.mrb[0].mxu0
    %v830 = vadd.f32 0.0, %v829
    %v831 = vpop.f32.mrb[0].mxu0
    %832 = vmatprep.mubr.bf16.mxu0 0
    %833 = vmatmul.mubr.bf16.gmra.mrb[0].mxu0 %v784
    %v834 = vpop.f32.mrb[0].mxu0
    %v835 = vadd.f32 0.0, %v834
    %v836 = vpop.f32.mrb[0].mxu0
    %v837 = vpop.f32.mrb[0].mxu0
    %v838 = vadd.f32 0.0, %v837
    %v839 = vpop.f32.mrb[0].mxu0
    %840 = vmatprep.mubr.bf16.mxu0 0
    %841 = vmatmul.mubr.bf16.gmra.mrb[0].mxu0 %v787
    %v842 = vpop.f32.mrb[0].mxu0
    %v843 = vadd.f32 0.0, %v842
    %v844 = vpop.f32.mrb[0].mxu0
    %v845 = vpop.f32.mrb[0].mxu0
    %v846 = vpop.f32.mrb[0].mxu0
    %847 = vdwg.mxu0
    %v848 = vadd.f32 %v735, %v827
    %v849 = vadd.f32 %v736, %v830
    %v850 = vadd.f32 %v737, %v835
    %v851 = vadd.f32 %v738, %v838
    %v852 = vadd.f32 %v739, %v843
    %v853 = vld [vmem:[%s2] sm:$0x1]
    %v855 = vlaneseq
    %v856 = vshrl.u32 %v855, 7
    %v857 = vsub.s32 0, %v856
    %v858 = vrot.slane %v853, %v857
    %v860 = vadd.f32 %v848, %v858
    %v861 = vadd.f32 %v849, %v858
    %v862 = vadd.f32 %v850, %v858
    %v863 = vadd.f32 %v851, %v858
    %v864 = vadd.f32 %v852, %v858
    %v865 = vmax.f32 %v860, 0.0
    %v866 = vmax.f32 %v861, 0.0
    %v867 = vmax.f32 %v862, 0.0
    %v868 = vmax.f32 %v863, 0.0
    %v869 = vmax.f32 %v864, 0.0
    %875 = vrot.lane.b32.xlu0 %v865, 122
    %v876 = vpop.permute.xlu0 %875
    %877 = vrot.lane.b32.xlu0 %v866, 122
    %v878 = vpop.permute.xlu0 %877
    %879 = vrot.lane.b32.xlu0 %v867, 122
    %v880 = vpop.permute.xlu0 %879
    %881 = vrot.lane.b32.xlu0 %v868, 122
    %v882 = vpop.permute.xlu0 %881
    %883 = vrot.lane.b32.xlu0 %v869, 122
    %v884 = vpop.permute.xlu0 %883
    %v890 = vmax.f32 %v865, %v876
    %v891 = vmax.f32 %v866, %v878
    %v892 = vmax.f32 %v867, %v880
    %v893 = vmax.f32 %v868, %v882
    %v894 = vmax.f32 %v869, %v884
    %vm895 = vcmask 736256
    %896 = vst.msk [vmem:[#allocation3] sm:$0xff] %vm895, %v890
    %897 = vst.msk [vmem:[#allocation3 + $0x8] sm:$0xff] %vm895, %v891
    %898 = vst.msk [vmem:[#allocation3 + $0x10] sm:$0xff] %vm895, %v892
    %899 = vst.msk [vmem:[#allocation3 + $0x18] sm:$0xff] %vm895, %v893
    %vm900 = vcmask 730112
    %901 = vst.msk [vmem:[#allocation3 + $0x20] sm:$0x3] %vm900, %v894
    %902 = vst.msk [vmem:[#allocation4] sm:$0xff] %vm895, 0.0
    %903 = vst.msk [vmem:[#allocation4 + $0x8] sm:$0xff] %vm895, 0.0
    %904 = vst.msk [vmem:[#allocation4 + $0x10] sm:$0xff] %vm895, 0.0
    %v905 = vld [vmem:[#allocation3] ss:$2 sm:$0x7f]
    %s906 = scalar_lea.vmem [#allocation3], 1
    %v907 = vld [vmem:[%s906] ss:$2 sm:$0x7f]
    %vm908 = vcmask 735232
    %909 = vst.msk [vmem:[#allocation4 + $0x2] sm:$0x7f] %vm908, %v905
    %v910 = vld [vmem:[#allocation4 + $0x3] sm:$0x7f]
    %v911 = vmax.f32 %v910, %v907
    %912 = vst.msk [vmem:[#allocation4 + $0x3] sm:$0x7f] %vm908, %v911
    %s913 = scalar_lea.vmem [#allocation3], 20
    %v914 = vld [vmem:[%s913] ss:$2 sm:$0x7f]
    %s915 = scalar_lea.vmem [#allocation3], 21
    %v916 = vld [vmem:[%s915] ss:$2 sm:$0x7f]
    %917 = vst.msk [vmem:[#allocation4 + $0xe] sm:$0x7f] %vm908, %v914
    %v918 = vld [vmem:[#allocation4 + $0xf] sm:$0x7f]
    %v919 = vmax.f32 %v918, %v916
    %920 = vst.msk [vmem:[#allocation4 + $0xf] sm:$0x7f] %vm908, %v919
    %v921 = vld [vmem:[#allocation4] sm:$0xff]
    %v922 = vld [vmem:[#allocation4 + $0x8] sm:$0xff]
    %v923 = vld [vmem:[#allocation4 + $0x10] sm:$0xf]
    %v924 = vpack.c.bf16 %v922, %v921
    %v925 = vpack.c.bf16 %v923, %v923
    %v926 = vld [vmem:[%s3] sm:$0xf]
    %v927 = vld [vmem:[%s3 + $0x4] sm:$0xf]
    %v928 = vld [vmem:[%s3 + $0x8] sm:$0xf]
    %v929 = vld [vmem:[%s3 + $0xc] sm:$0xf]
    %v930 = vld [vmem:[%s3 + $0x10] sm:$0xf]
    %v931 = vld [vmem:[%s3 + $0x14] sm:$0xf]
    %v932 = vld [vmem:[%s3 + $0x18] sm:$0xf]
    %v933 = vld [vmem:[%s3 + $0x1c] sm:$0xf]
    %v934 = vld [vmem:[%s3 + $0x20] sm:$0xf]
    %v935 = vld [vmem:[%s3 + $0x24] sm:$0xf]
    %v936 = vld [vmem:[%s3 + $0x28] sm:$0xf]
    %v937 = vld [vmem:[%s3 + $0x2c] sm:$0x1]
    %v938 = vld [vmem:[#allocation4 + $0x1] sm:$0xff]
    %v939 = vld [vmem:[#allocation4 + $0x9] sm:$0xff]
    %v940 = vld [vmem:[#allocation4 + $0x11] sm:$0xf]
    %v941 = vpack.c.bf16 %v939, %v938
    %v942 = vpack.c.bf16 %v940, %v940
    %s943 = scalar_lea.vmem %s3, 48
    %v944 = vld [vmem:[%s943] sm:$0xf]
    %v945 = vld [vmem:[%s943 + $0x4] sm:$0xf]
    %v946 = vld [vmem:[%s943 + $0x8] sm:$0xf]
    %v947 = vld [vmem:[%s943 + $0xc] sm:$0xf]
    %v948 = vld [vmem:[%s943 + $0x10] sm:$0xf]
    %v949 = vld [vmem:[%s943 + $0x14] sm:$0xf]
    %v950 = vld [vmem:[%s943 + $0x18] sm:$0xf]
    %v951 = vld [vmem:[%s943 + $0x1c] sm:$0xf]
    %v952 = vld [vmem:[%s943 + $0x20] sm:$0xf]
    %v953 = vld [vmem:[%s943 + $0x24] sm:$0xf]
    %v954 = vld [vmem:[%s943 + $0x28] sm:$0xf]
    %v955 = vld [vmem:[%s943 + $0x2c] sm:$0x1]
    %v968 = vunpack.c.l.b16 %v944
    %v969 = vunpack.c.l.b16 %v945
    %v970 = vunpack.c.l.b16 %v946
    %v971 = vunpack.c.l.b16 %v947
    %v972 = vunpack.c.l.b16 %v948
    %v973 = vunpack.c.l.b16 %v949
    %v974 = vunpack.c.l.b16 %v950
    %v975 = vunpack.c.l.b16 %v951
    %v976 = vunpack.c.l.b16 %v952
    %v977 = vunpack.c.l.b16 %v953
    %v978 = vunpack.c.l.b16 %v954
    %v979 = vunpack.c.l.b16 %v955
    %v980 = vpack.c.b16 %v969, %v968
    %v981 = vpack.c.b16 %v971, %v970
    %v982 = vpack.c.b16 %v973, %v972
    %v983 = vpack.c.b16 %v975, %v974
    %v984 = vpack.c.b16 %v977, %v976
    %v985 = vpack.c.b16 %v979, %v978
    %v992 = vsel %vm895, %v941, 0
    %v995 = vsel %vm895, %v942, 0
    %vm997 = vcmask 1044480
    %v999 = vsel %vm997, %v985, 0
    %1001 = vmatprep.subr.bf16.mxu0 0
    %1002 = vmatpush1.bf16.msra.mxu0 %v980
    %1003 = vmatprep.subr.bf16.mxu0 0
    %1004 = vmatpush1.bf16.msra.mxu0 %v981
    %1005 = vmatprep.subr.bf16.mxu0 0
    %1006 = vmatpush1.bf16.msra.mxu0 %v982
    %1007 = vmatprep.subr.bf16.mxu0 0
    %1008 = vmatpush1.bf16.msra.mxu0 %v983
    %1009 = vmatprep.subr.bf16.mxu0 0
    %1010 = vmatpush1.bf16.msra.mxu0 %v984
    %1011 = vmatprep.subr.bf16.mxu0 0
    %1012 = vmatpush1.bf16.msra.mxu0 %v999
    %1013 = vmatprep.subr.bf16.mxu0 0
    %1014 = vmatpush1.bf16.msra.mxu0 0
    %1015 = vmatprep.subr.bf16.mxu0 0
    %1016 = vmatpush1.bf16.msra.mxu0 0
    %1017 = vmatprep.subr.bf16.mxu0 0
    %1018 = vmatpush1.bf16.msra.mxu0 0
    %1019 = vmatprep.subr.bf16.mxu0 0
    %1020 = vmatpush1.bf16.msra.mxu0 0
    %1021 = vmatprep.subr.bf16.mxu0 0
    %1022 = vmatpush1.bf16.msra.mxu0 0
    %1023 = vmatprep.subr.bf16.mxu0 0
    %1024 = vmatpush1.bf16.msra.mxu0 0
    %1025 = vmatprep.subr.bf16.mxu0 0
    %1026 = vmatpush1.bf16.msra.mxu0 0
    %1027 = vmatprep.subr.bf16.mxu0 0
    %1028 = vmatpush1.bf16.msra.mxu0 0
    %1029 = vmatprep.subr.bf16.mxu0 0
    %1030 = vmatpush1.bf16.msra.mxu0 0
    %1031 = vmatprep.subr.bf16.mxu0 0
    %1032 = vmatpush1.bf16.msra.mxu0 0
    %1033 = vmatprep.mubr.bf16.mxu0 0
    %1034 = vmatmul.mubr.bf16.gmra.mrb[0].mxu0 %v992
    %v1035 = vpop.f32.mrb[0].mxu0
    %v1036 = vadd.f32 0.0, %v1035
    %v1037 = vpop.f32.mrb[0].mxu0
    %v1038 = vpop.f32.mrb[0].mxu0
    %v1039 = vadd.f32 0.0, %v1038
    %v1040 = vpop.f32.mrb[0].mxu0
    %1041 = vmatprep.mubr.bf16.mxu0 0
    %1042 = vmatmul.mubr.bf16.gmra.mrb[0].mxu0 %v995
    %v1043 = vpop.f32.mrb[0].mxu0
    %v1044 = vadd.f32 0.0, %v1043
    %v1045 = vpop.f32.mrb[0].mxu0
    %v1046 = vpop.f32.mrb[0].mxu0
    %v1047 = vpop.f32.mrb[0].mxu0
    %1048 = vdwg.mxu0
    %v1061 = vunpack.c.l.b16 %v926
    %v1062 = vunpack.c.l.b16 %v927
    %v1063 = vunpack.c.l.b16 %v928
    %v1064 = vunpack.c.l.b16 %v929
    %v1065 = vunpack.c.l.b16 %v930
    %v1066 = vunpack.c.l.b16 %v931
    %v1067 = vunpack.c.l.b16 %v932
    %v1068 = vunpack.c.l.b16 %v933
    %v1069 = vunpack.c.l.b16 %v934
    %v1070 = vunpack.c.l.b16 %v935
    %v1071 = vunpack.c.l.b16 %v936
    %v1072 = vunpack.c.l.b16 %v937
    %v1073 = vpack.c.b16 %v1062, %v1061
    %v1074 = vpack.c.b16 %v1064, %v1063
    %v1075 = vpack.c.b16 %v1066, %v1065
    %v1076 = vpack.c.b16 %v1068, %v1067
    %v1077 = vpack.c.b16 %v1070, %v1069
    %v1078 = vpack.c.b16 %v1072, %v1071
    %v1085 = vsel %vm895, %v924, 0
    %v1088 = vsel %vm895, %v925, 0
    %v1091 = vsel %vm997, %v1078, 0
    %1093 = vmatprep.subr.bf16.mxu0 0
    %1094 = vmatpush1.bf16.msra.mxu0 %v1073
    %1095 = vmatprep.subr.bf16.mxu0 0
    %1096 = vmatpush1.bf16.msra.mxu0 %v1074
    %1097 = vmatprep.subr.bf16.mxu0 0
    %1098 = vmatpush1.bf16.msra.mxu0 %v1075
    %1099 = vmatprep.subr.bf16.mxu0 0
    %1100 = vmatpush1.bf16.msra.mxu0 %v1076
    %1101 = vmatprep.subr.bf16.mxu0 0
    %1102 = vmatpush1.bf16.msra.mxu0 %v1077
    %1103 = vmatprep.subr.bf16.mxu0 0
    %1104 = vmatpush1.bf16.msra.mxu0 %v1091
    %1105 = vmatprep.subr.bf16.mxu0 0
    %1106 = vmatpush1.bf16.msra.mxu0 0
    %1107 = vmatprep.subr.bf16.mxu0 0
    %1108 = vmatpush1.bf16.msra.mxu0 0
    %1109 = vmatprep.subr.bf16.mxu0 0
    %1110 = vmatpush1.bf16.msra.mxu0 0
    %1111 = vmatprep.subr.bf16.mxu0 0
    %1112 = vmatpush1.bf16.msra.mxu0 0
    %1113 = vmatprep.subr.bf16.mxu0 0
    %1114 = vmatpush1.bf16.msra.mxu0 0
    %1115 = vmatprep.subr.bf16.mxu0 0
    %1116 = vmatpush1.bf16.msra.mxu0 0
    %1117 = vmatprep.subr.bf16.mxu0 0
    %1118 = vmatpush1.bf16.msra.mxu0 0
    %1119 = vmatprep.subr.bf16.mxu0 0
    %1120 = vmatpush1.bf16.msra.mxu0 0
    %1121 = vmatprep.subr.bf16.mxu0 0
    %1122 = vmatpush1.bf16.msra.mxu0 0
    %1123 = vmatprep.subr.bf16.mxu0 0
    %1124 = vmatpush1.bf16.msra.mxu0 0
    %1125 = vmatprep.mubr.bf16.mxu0 0
    %1126 = vmatmul.mubr.bf16.gmra.mrb[0].mxu0 %v1085
    %v1127 = vpop.f32.mrb[0].mxu0
    %v1128 = vadd.f32 %v1036, %v1127
    %v1129 = vpop.f32.mrb[0].mxu0
    %v1130 = vpop.f32.mrb[0].mxu0
    %v1131 = vadd.f32 %v1039, %v1130
    %v1132 = vpop.f32.mrb[0].mxu0
    %1133 = vmatprep.mubr.bf16.mxu0 0
    %1134 = vmatmul.mubr.bf16.gmra.mrb[0].mxu0 %v1088
    %v1135 = vpop.f32.mrb[0].mxu0
    %v1136 = vadd.f32 %v1044, %v1135
    %v1137 = vpop.f32.mrb[0].mxu0
    %v1138 = vpop.f32.mrb[0].mxu0
    %v1139 = vpop.f32.mrb[0].mxu0
    %1140 = vdwg.mxu0
    %v1141 = vld [vmem:[#allocation4 + $0x2] sm:$0xff]
    %v1142 = vld [vmem:[#allocation4 + $0xa] sm:$0xff]
    %v1143 = vld [vmem:[#allocation4 + $0x12] sm:$0xf]
    %v1144 = vpack.c.bf16 %v1142, %v1141
    %v1145 = vpack.c.bf16 %v1143, %v1143
    %s1146 = scalar_lea.vmem %s3, 96
    %v1147 = vld [vmem:[%s1146] sm:$0xf]
    %v1148 = vld [vmem:[%s1146 + $0x4] sm:$0xf]
    %v1149 = vld [vmem:[%s1146 + $0x8] sm:$0xf]
    %v1150 = vld [vmem:[%s1146 + $0xc] sm:$0xf]
    %v1151 = vld [vmem:[%s1146 + $0x10] sm:$0xf]
    %v1152 = vld [vmem:[%s1146 + $0x14] sm:$0xf]
    %v1153 = vld [vmem:[%s1146 + $0x18] sm:$0xf]
    %v1154 = vld [vmem:[%s1146 + $0x1c] sm:$0xf]
    %v1155 = vld [vmem:[%s1146 + $0x20] sm:$0xf]
    %v1156 = vld [vmem:[%s1146 + $0x24] sm:$0xf]
    %v1157 = vld [vmem:[%s1146 + $0x28] sm:$0xf]
    %v1158 = vld [vmem:[%s1146 + $0x2c] sm:$0x1]
    %v1171 = vunpack.c.l.b16 %v1147
    %v1172 = vunpack.c.l.b16 %v1148
    %v1173 = vunpack.c.l.b16 %v1149
    %v1174 = vunpack.c.l.b16 %v1150
    %v1175 = vunpack.c.l.b16 %v1151
    %v1176 = vunpack.c.l.b16 %v1152
    %v1177 = vunpack.c.l.b16 %v1153
    %v1178 = vunpack.c.l.b16 %v1154
    %v1179 = vunpack.c.l.b16 %v1155
    %v1180 = vunpack.c.l.b16 %v1156
    %v1181 = vunpack.c.l.b16 %v1157
    %v1182 = vunpack.c.l.b16 %v1158
    %v1183 = vpack.c.b16 %v1172, %v1171
    %v1184 = vpack.c.b16 %v1174, %v1173
    %v1185 = vpack.c.b16 %v1176, %v1175
    %v1186 = vpack.c.b16 %v1178, %v1177
    %v1187 = vpack.c.b16 %v1180, %v1179
    %v1188 = vpack.c.b16 %v1182, %v1181
    %v1195 = vsel %vm895, %v1144, 0
    %v1198 = vsel %vm895, %v1145, 0
    %v1201 = vsel %vm997, %v1188, 0
    %1203 = vmatprep.subr.bf16.mxu0 0
    %1204 = vmatpush1.bf16.msra.mxu0 %v1183
    %1205 = vmatprep.subr.bf16.mxu0 0
    %1206 = vmatpush1.bf16.msra.mxu0 %v1184
    %1207 = vmatprep.subr.bf16.mxu0 0
    %1208 = vmatpush1.bf16.msra.mxu0 %v1185
    %1209 = vmatprep.subr.bf16.mxu0 0
    %1210 = vmatpush1.bf16.msra.mxu0 %v1186
    %1211 = vmatprep.subr.bf16.mxu0 0
    %1212 = vmatpush1.bf16.msra.mxu0 %v1187
    %1213 = vmatprep.subr.bf16.mxu0 0
    %1214 = vmatpush1.bf16.msra.mxu0 %v1201
    %1215 = vmatprep.subr.bf16.mxu0 0
    %1216 = vmatpush1.bf16.msra.mxu0 0
    %1217 = vmatprep.subr.bf16.mxu0 0
    %1218 = vmatpush1.bf16.msra.mxu0 0
    %1219 = vmatprep.subr.bf16.mxu0 0
    %1220 = vmatpush1.bf16.msra.mxu0 0
    %1221 = vmatprep.subr.bf16.mxu0 0
    %1222 = vmatpush1.bf16.msra.mxu0 0
    %1223 = vmatprep.subr.bf16.mxu0 0
    %1224 = vmatpush1.bf16.msra.mxu0 0
    %1225 = vmatprep.subr.bf16.mxu0 0
    %1226 = vmatpush1.bf16.msra.mxu0 0
    %1227 = vmatprep.subr.bf16.mxu0 0
    %1228 = vmatpush1.bf16.msra.mxu0 0
    %1229 = vmatprep.subr.bf16.mxu0 0
    %1230 = vmatpush1.bf16.msra.mxu0 0
    %1231 = vmatprep.subr.bf16.mxu0 0
    %1232 = vmatpush1.bf16.msra.mxu0 0
    %1233 = vmatprep.subr.bf16.mxu0 0
    %1234 = vmatpush1.bf16.msra.mxu0 0
    %1235 = vmatprep.mubr.bf16.mxu0 0
    %1236 = vmatmul.mubr.bf16.gmra.mrb[0].mxu0 %v1195
    %v1237 = vpop.f32.mrb[0].mxu0
    %v1238 = vadd.f32 0.0, %v1237
    %v1239 = vpop.f32.mrb[0].mxu0
    %v1240 = vpop.f32.mrb[0].mxu0
    %v1241 = vadd.f32 0.0, %v1240
    %v1242 = vpop.f32.mrb[0].mxu0
    %1243 = vmatprep.mubr.bf16.mxu0 0
    %1244 = vmatmul.mubr.bf16.gmra.mrb[0].mxu0 %v1198
    %v1245 = vpop.f32.mrb[0].mxu0
    %v1246 = vadd.f32 0.0, %v1245
    %v1247 = vpop.f32.mrb[0].mxu0
    %v1248 = vpop.f32.mrb[0].mxu0
    %v1249 = vpop.f32.mrb[0].mxu0
    %1250 = vdwg.mxu0
    %v1251 = vadd.f32 %v1128, %v1238
    %v1252 = vadd.f32 %v1131, %v1241
    %v1253 = vadd.f32 %v1136, %v1246
    %v1254 = vld [vmem:[#allocation4 + $0x3] sm:$0xff]
    %v1255 = vld [vmem:[#allocation4 + $0xb] sm:$0xff]
    %v1256 = vld [vmem:[#allocation4 + $0x13] sm:$0xf]
    %v1257 = vpack.c.bf16 %v1255, %v1254
    %v1258 = vpack.c.bf16 %v1256, %v1256
    %s1259 = scalar_lea.vmem %s3, 144
    %v1260 = vld [vmem:[%s1259] sm:$0xf]
    %v1261 = vld [vmem:[%s1259 + $0x4] sm:$0xf]
    %v1262 = vld [vmem:[%s1259 + $0x8] sm:$0xf]
    %v1263 = vld [vmem:[%s1259 + $0xc] sm:$0xf]
    %v1264 = vld [vmem:[%s1259 + $0x10] sm:$0xf]
    %v1265 = vld [vmem:[%s1259 + $0x14] sm:$0xf]
    %v1266 = vld [vmem:[%s1259 + $0x18] sm:$0xf]
    %v1267 = vld [vmem:[%s1259 + $0x1c] sm:$0xf]
    %v1268 = vld [vmem:[%s1259 + $0x20] sm:$0xf]
    %v1269 = vld [vmem:[%s1259 + $0x24] sm:$0xf]
    %v1270 = vld [vmem:[%s1259 + $0x28] sm:$0xf]
    %v1271 = vld [vmem:[%s1259 + $0x2c] sm:$0x1]
    %v1284 = vunpack.c.l.b16 %v1260
    %v1285 = vunpack.c.l.b16 %v1261
    %v1286 = vunpack.c.l.b16 %v1262
    %v1287 = vunpack.c.l.b16 %v1263
    %v1288 = vunpack.c.l.b16 %v1264
    %v1289 = vunpack.c.l.b16 %v1265
    %v1290 = vunpack.c.l.b16 %v1266
    %v1291 = vunpack.c.l.b16 %v1267
    %v1292 = vunpack.c.l.b16 %v1268
    %v1293 = vunpack.c.l.b16 %v1269
    %v1294 = vunpack.c.l.b16 %v1270
    %v1295 = vunpack.c.l.b16 %v1271
    %v1296 = vpack.c.b16 %v1285, %v1284
    %v1297 = vpack.c.b16 %v1287, %v1286
    %v1298 = vpack.c.b16 %v1289, %v1288
    %v1299 = vpack.c.b16 %v1291, %v1290
    %v1300 = vpack.c.b16 %v1293, %v1292
    %v1301 = vpack.c.b16 %v1295, %v1294
    %v1308 = vsel %vm895, %v1257, 0
    %v1311 = vsel %vm895, %v1258, 0
    %v1314 = vsel %vm997, %v1301, 0
    %1316 = vmatprep.subr.bf16.mxu0 0
    %1317 = vmatpush1.bf16.msra.mxu0 %v1296
    %1318 = vmatprep.subr.bf16.mxu0 0
    %1319 = vmatpush1.bf16.msra.mxu0 %v1297
    %1320 = vmatprep.subr.bf16.mxu0 0
    %1321 = vmatpush1.bf16.msra.mxu0 %v1298
    %1322 = vmatprep.subr.bf16.mxu0 0
    %1323 = vmatpush1.bf16.msra.mxu0 %v1299
    %1324 = vmatprep.subr.bf16.mxu0 0
    %1325 = vmatpush1.bf16.msra.mxu0 %v1300
    %1326 = vmatprep.subr.bf16.mxu0 0
    %1327 = vmatpush1.bf16.msra.mxu0 %v1314
    %1328 = vmatprep.subr.bf16.mxu0 0
    %1329 = vmatpush1.bf16.msra.mxu0 0
    %1330 = vmatprep.subr.bf16.mxu0 0
    %1331 = vmatpush1.bf16.msra.mxu0 0
    %1332 = vmatprep.subr.bf16.mxu0 0
    %1333 = vmatpush1.bf16.msra.mxu0 0
    %1334 = vmatprep.subr.bf16.mxu0 0
    %1335 = vmatpush1.bf16.msra.mxu0 0
    %1336 = vmatprep.subr.bf16.mxu0 0
    %1337 = vmatpush1.bf16.msra.mxu0 0
    %1338 = vmatprep.subr.bf16.mxu0 0
    %1339 = vmatpush1.bf16.msra.mxu0 0
    %1340 = vmatprep.subr.bf16.mxu0 0
    %1341 = vmatpush1.bf16.msra.mxu0 0
    %1342 = vmatprep.subr.bf16.mxu0 0
    %1343 = vmatpush1.bf16.msra.mxu0 0
    %1344 = vmatprep.subr.bf16.mxu0 0
    %1345 = vmatpush1.bf16.msra.mxu0 0
    %1346 = vmatprep.subr.bf16.mxu0 0
    %1347 = vmatpush1.bf16.msra.mxu0 0
    %1348 = vmatprep.mubr.bf16.mxu0 0
    %1349 = vmatmul.mubr.bf16.gmra.mrb[0].mxu0 %v1308
    %v1350 = vpop.f32.mrb[0].mxu0
    %v1351 = vadd.f32 0.0, %v1350
    %v1352 = vpop.f32.mrb[0].mxu0
    %v1353 = vpop.f32.mrb[0].mxu0
    %v1354 = vadd.f32 0.0, %v1353
    %v1355 = vpop.f32.mrb[0].mxu0
    %1356 = vmatprep.mubr.bf16.mxu0 0
    %1357 = vmatmul.mubr.bf16.gmra.mrb[0].mxu0 %v1311
    %v1358 = vpop.f32.mrb[0].mxu0
    %v1359 = vadd.f32 0.0, %v1358
    %v1360 = vpop.f32.mrb[0].mxu0
    %v1361 = vpop.f32.mrb[0].mxu0
    %v1362 = vpop.f32.mrb[0].mxu0
    %1363 = vdwg.mxu0
    %v1364 = vadd.f32 %v1251, %v1351
    %v1365 = vadd.f32 %v1252, %v1354
    %v1366 = vadd.f32 %v1253, %v1359
    %v1367 = vld [vmem:[#allocation4 + $0x4] sm:$0xff]
    %v1368 = vld [vmem:[#allocation4 + $0xc] sm:$0xff]
    %v1369 = vld [vmem:[#allocation4 + $0x14] sm:$0xf]
    %v1370 = vpack.c.bf16 %v1368, %v1367
    %v1371 = vpack.c.bf16 %v1369, %v1369
    %s1372 = scalar_lea.vmem %s3, 192
    %v1373 = vld [vmem:[%s1372] sm:$0xf]
    %v1374 = vld [vmem:[%s1372 + $0x4] sm:$0xf]
    %v1375 = vld [vmem:[%s1372 + $0x8] sm:$0xf]
    %v1376 = vld [vmem:[%s1372 + $0xc] sm:$0xf]
    %v1377 = vld [vmem:[%s1372 + $0x10] sm:$0xf]
    %v1378 = vld [vmem:[%s1372 + $0x14] sm:$0xf]
    %v1379 = vld [vmem:[%s1372 + $0x18] sm:$0xf]
    %v1380 = vld [vmem:[%s1372 + $0x1c] sm:$0xf]
    %v1381 = vld [vmem:[%s1372 + $0x20] sm:$0xf]
    %v1382 = vld [vmem:[%s1372 + $0x24] sm:$0xf]
    %v1383 = vld [vmem:[%s1372 + $0x28] sm:$0xf]
    %v1384 = vld [vmem:[%s1372 + $0x2c] sm:$0x1]
    %v1397 = vunpack.c.l.b16 %v1373
    %v1398 = vunpack.c.l.b16 %v1374
    %v1399 = vunpack.c.l.b16 %v1375
    %v1400 = vunpack.c.l.b16 %v1376
    %v1401 = vunpack.c.l.b16 %v1377
    %v1402 = vunpack.c.l.b16 %v1378
    %v1403 = vunpack.c.l.b16 %v1379
    %v1404 = vunpack.c.l.b16 %v1380
    %v1405 = vunpack.c.l.b16 %v1381
    %v1406 = vunpack.c.l.b16 %v1382
    %v1407 = vunpack.c.l.b16 %v1383
    %v1408 = vunpack.c.l.b16 %v1384
    %v1409 = vpack.c.b16 %v1398, %v1397
    %v1410 = vpack.c.b16 %v1400, %v1399
    %v1411 = vpack.c.b16 %v1402, %v1401
    %v1412 = vpack.c.b16 %v1404, %v1403
    %v1413 = vpack.c.b16 %v1406, %v1405
    %v1414 = vpack.c.b16 %v1408, %v1407
    %v1421 = vsel %vm895, %v1370, 0
    %v1424 = vsel %vm895, %v1371, 0
    %v1427 = vsel %vm997, %v1414, 0
    %1429 = vmatprep.subr.bf16.mxu0 0
    %1430 = vmatpush1.bf16.msra.mxu0 %v1409
    %1431 = vmatprep.subr.bf16.mxu0 0
    %1432 = vmatpush1.bf16.msra.mxu0 %v1410
    %1433 = vmatprep.subr.bf16.mxu0 0
    %1434 = vmatpush1.bf16.msra.mxu0 %v1411
    %1435 = vmatprep.subr.bf16.mxu0 0
    %1436 = vmatpush1.bf16.msra.mxu0 %v1412
    %1437 = vmatprep.subr.bf16.mxu0 0
    %1438 = vmatpush1.bf16.msra.mxu0 %v1413
    %1439 = vmatprep.subr.bf16.mxu0 0
    %1440 = vmatpush1.bf16.msra.mxu0 %v1427
    %1441 = vmatprep.subr.bf16.mxu0 0
    %1442 = vmatpush1.bf16.msra.mxu0 0
    %1443 = vmatprep.subr.bf16.mxu0 0
    %1444 = vmatpush1.bf16.msra.mxu0 0
    %1445 = vmatprep.subr.bf16.mxu0 0
    %1446 = vmatpush1.bf16.msra.mxu0 0
    %1447 = vmatprep.subr.bf16.mxu0 0
    %1448 = vmatpush1.bf16.msra.mxu0 0
    %1449 = vmatprep.subr.bf16.mxu0 0
    %1450 = vmatpush1.bf16.msra.mxu0 0
    %1451 = vmatprep.subr.bf16.mxu0 0
    %1452 = vmatpush1.bf16.msra.mxu0 0
    %1453 = vmatprep.subr.bf16.mxu0 0
    %1454 = vmatpush1.bf16.msra.mxu0 0
    %1455 = vmatprep.subr.bf16.mxu0 0
    %1456 = vmatpush1.bf16.msra.mxu0 0
    %1457 = vmatprep.subr.bf16.mxu0 0
    %1458 = vmatpush1.bf16.msra.mxu0 0
    %1459 = vmatprep.subr.bf16.mxu0 0
    %1460 = vmatpush1.bf16.msra.mxu0 0
    %1461 = vmatprep.mubr.bf16.mxu0 0
    %1462 = vmatmul.mubr.bf16.gmra.mrb[0].mxu0 %v1421
    %v1463 = vpop.f32.mrb[0].mxu0
    %v1464 = vadd.f32 0.0, %v1463
    %v1465 = vpop.f32.mrb[0].mxu0
    %v1466 = vpop.f32.mrb[0].mxu0
    %v1467 = vadd.f32 0.0, %v1466
    %v1468 = vpop.f32.mrb[0].mxu0
    %1469 = vmatprep.mubr.bf16.mxu0 0
    %1470 = vmatmul.mubr.bf16.gmra.mrb[0].mxu0 %v1424
    %v1471 = vpop.f32.mrb[0].mxu0
    %v1472 = vadd.f32 0.0, %v1471
    %v1473 = vpop.f32.mrb[0].mxu0
    %v1474 = vpop.f32.mrb[0].mxu0
    %v1475 = vpop.f32.mrb[0].mxu0
    %1476 = vdwg.mxu0
    %v1477 = vadd.f32 %v1364, %v1464
    %v1478 = vadd.f32 %v1365, %v1467
    %v1479 = vadd.f32 %v1366, %v1472
    %v1480 = vld [vmem:[%s4] sm:$0x1]
    %v1482 = vlaneseq
    %v1483 = vshrl.u32 %v1482, 7
    %v1484 = vsub.s32 0, %v1483
    %v1485 = vrot.slane %v1480, %v1484
    %v1487 = vadd.f32 %v1477, %v1485
    %v1488 = vadd.f32 %v1478, %v1485
    %v1489 = vadd.f32 %v1479, %v1485
    %v1490 = vmax.f32 %v1487, 0.0
    %v1491 = vmax.f32 %v1488, 0.0
    %v1492 = vmax.f32 %v1489, 0.0
    %1493 = vst [vmem:[#allocation5] sm:$0xff] %v1490
    %1494 = vst [vmem:[#allocation5 + $0x8] sm:$0xff] %v1491
    %1495 = vst [vmem:[#allocation5 + $0x10] sm:$0xf] %v1492
    %v1496 = vld [vmem:[#allocation5] sm:$0x1]
    %1497 = vst [vmem:[#allocation6] sm:$0x1] %v1496
    %v1498 = vld [vmem:[#allocation5 + $0x1] sm:$0x1]
    %1499 = vst [vmem:[#allocation6 + $0x2] sm:$0x1] %v1498
    %v1500 = vld [vmem:[#allocation5 + $0x2] sm:$0x1]
    %1501 = vst [vmem:[#allocation6 + $0x4] sm:$0x1] %v1500
    %v1502 = vld [vmem:[#allocation5 + $0x3] sm:$0x1]
    %1503 = vst [vmem:[#allocation6 + $0x6] sm:$0x1] %v1502
    %v1504 = vld [vmem:[#allocation5 + $0x4] sm:$0x1]
    %1505 = vst [vmem:[#allocation6 + $0x8] sm:$0x1] %v1504
    %v1506 = vld [vmem:[#allocation5 + $0x5] sm:$0x1]
    %1507 = vst [vmem:[#allocation6 + $0xa] sm:$0x1] %v1506
    %v1508 = vld [vmem:[#allocation5 + $0x6] sm:$0x1]
    %1509 = vst [vmem:[#allocation6 + $0xc] sm:$0x1] %v1508
    %v1510 = vld [vmem:[#allocation5 + $0x7] sm:$0x1]
    %1511 = vst [vmem:[#allocation6 + $0xe] sm:$0x1] %v1510
    %v1512 = vld [vmem:[#allocation5 + $0xc] sm:$0x1]
    %1513 = vst [vmem:[#allocation6 + $0x1] sm:$0x1] %v1512
    %v1514 = vld [vmem:[#allocation5 + $0xd] sm:$0x1]
    %1515 = vst [vmem:[#allocation6 + $0x3] sm:$0x1] %v1514
    %v1516 = vld [vmem:[#allocation5 + $0xe] sm:$0x1]
    %1517 = vst [vmem:[#allocation6 + $0x5] sm:$0x1] %v1516
    %v1518 = vld [vmem:[#allocation5 + $0xf] sm:$0x1]
    %1519 = vst [vmem:[#allocation6 + $0x7] sm:$0x1] %v1518
    %v1520 = vld [vmem:[#allocation5 + $0x10] sm:$0x1]
    %1521 = vst [vmem:[#allocation6 + $0x9] sm:$0x1] %v1520
    %v1522 = vld [vmem:[#allocation5 + $0x11] sm:$0x1]
    %1523 = vst [vmem:[#allocation6 + $0xb] sm:$0x1] %v1522
    %v1524 = vld [vmem:[#allocation5 + $0x12] sm:$0x1]
    %1525 = vst [vmem:[#allocation6 + $0xd] sm:$0x1] %v1524
    %v1526 = vld [vmem:[#allocation5 + $0x13] sm:$0x1]
    %1527 = vst [vmem:[#allocation6 + $0xf] sm:$0x1] %v1526
    %v1528 = vld [vmem:[#allocation6] sm:$0xff]
    %v1529 = vld [vmem:[#allocation6 + $0x8] sm:$0xff]
    %v1532 = vcombine.high %v1528, %v1528
    %v1534 = vunpack.c.l.s4 1983009808
    %v1535 = vunpack.c.0.s8 %v1534
    %v1536 = vlaneseq
    %v1537 = vshrl.u32 %v1536, 7
    %v1538 = vsub.s32 %v1535, %v1537
    %v1539 = vrot.slane %v1528, %v1538
    %v1541 = vunpack.c.l.s4 1983009808
    %v1542 = vunpack.c.0.s8 %v1541
    %v1543 = vlaneseq
    %v1544 = vshrl.u32 %v1543, 7
    %v1545 = vsub.s32 %v1542, %v1544
    %v1546 = vrot.slane %v1532, %v1545
    %v1547 = vcombine.high %v1539, %v1539
    %v1548 = vcombine.high %v1546, %v1546
    %v1549 = vcombine.high %v1529, %v1529
    %v1551 = vunpack.c.l.s4 1983009808
    %v1552 = vunpack.c.0.s8 %v1551
    %v1553 = vlaneseq
    %v1554 = vshrl.u32 %v1553, 7
    %v1555 = vsub.s32 %v1552, %v1554
    %v1556 = vrot.slane %v1529, %v1555
    %v1558 = vunpack.c.l.s4 1983009808
    %v1559 = vunpack.c.0.s8 %v1558
    %v1560 = vlaneseq
    %v1561 = vshrl.u32 %v1560, 7
    %v1562 = vsub.s32 %v1559, %v1561
    %v1563 = vrot.slane %v1549, %v1562
    %v1564 = vcombine.high %v1556, %v1556
    %v1565 = vcombine.high %v1563, %v1563
    %v1574 = vpack.c.bf16 %v1539, %v1539
    %v1575 = vpack.c.bf16 %v1547, %v1547
    %v1576 = vpack.c.bf16 %v1546, %v1546
    %v1577 = vpack.c.bf16 %v1548, %v1548
    %v1578 = vpack.c.bf16 %v1556, %v1556
    %v1579 = vpack.c.bf16 %v1564, %v1564
    %v1580 = vpack.c.bf16 %v1563, %v1563
    %v1581 = vpack.c.bf16 %v1565, %v1565
    %v1582 = vld [vmem:[%s5] sm:$0xf]
    %v1583 = vld [vmem:[%s5 + $0x4] sm:$0xf]
    %v1584 = vld [vmem:[%s5 + $0x8] sm:$0xf]
    %v1585 = vld [vmem:[%s5 + $0xc] sm:$0xf]
    %v1586 = vld [vmem:[%s5 + $0x10] sm:$0xf]
    %v1587 = vld [vmem:[%s5 + $0x14] sm:$0xf]
    %v1588 = vld [vmem:[%s5 + $0x18] sm:$0xf]
    %v1589 = vld [vmem:[%s5 + $0x1c] sm:$0xf]
    %v1590 = vld [vmem:[%s5 + $0x20] sm:$0xf]
    %v1591 = vld [vmem:[%s5 + $0x24] sm:$0xf]
    %v1592 = vld [vmem:[%s5 + $0x28] sm:$0xf]
    %v1593 = vld [vmem:[%s5 + $0x2c] sm:$0xf]
    %v1594 = vld [vmem:[%s5 + $0x30] sm:$0xf]
    %v1595 = vld [vmem:[%s5 + $0x34] sm:$0xf]
    %v1596 = vld [vmem:[%s5 + $0x38] sm:$0xf]
    %v1597 = vld [vmem:[%s5 + $0x3c] sm:$0xf]
    %v1598 = vld [vmem:[%s5 + $0x40] sm:$0xf]
    %v1599 = vld [vmem:[%s5 + $0x44] sm:$0xf]
    %v1600 = vld [vmem:[%s5 + $0x48] sm:$0xf]
    %v1601 = vld [vmem:[%s5 + $0x4c] sm:$0xf]
    %v1602 = vld [vmem:[%s5 + $0x50] sm:$0xf]
    %v1603 = vld [vmem:[%s5 + $0x54] sm:$0xf]
    %v1604 = vld [vmem:[%s5 + $0x58] sm:$0xf]
    %v1605 = vld [vmem:[%s5 + $0x5c] sm:$0xf]
    %v1606 = vld [vmem:[%s5 + $0x60] sm:$0xf]
    %v1607 = vld [vmem:[%s5 + $0x64] sm:$0xf]
    %v1608 = vld [vmem:[%s5 + $0x68] sm:$0xf]
    %v1609 = vld [vmem:[%s5 + $0x6c] sm:$0xf]
    %v1610 = vld [vmem:[%s5 + $0x70] sm:$0xf]
    %v1611 = vld [vmem:[%s5 + $0x74] sm:$0xf]
    %v1612 = vld [vmem:[%s5 + $0x78] sm:$0xf]
    %v1613 = vld [vmem:[%s5 + $0x7c] sm:$0xf]
    %v1614 = vld [vmem:[%s5 + $0x80] sm:$0xf]
    %v1615 = vld [vmem:[%s5 + $0x84] sm:$0xf]
    %v1616 = vld [vmem:[%s5 + $0x88] sm:$0xf]
    %v1617 = vld [vmem:[%s5 + $0x8c] sm:$0xf]
    %v1618 = vld [vmem:[%s5 + $0x90] sm:$0xf]
    %v1619 = vld [vmem:[%s5 + $0x94] sm:$0xf]
    %v1620 = vld [vmem:[%s5 + $0x98] sm:$0xf]
    %v1621 = vld [vmem:[%s5 + $0x9c] sm:$0xf]
    %v1622 = vld [vmem:[%s5 + $0xa0] sm:$0xf]
    %v1623 = vld [vmem:[%s5 + $0xa4] sm:$0xf]
    %v1624 = vld [vmem:[%s5 + $0xa8] sm:$0xf]
    %v1625 = vld [vmem:[%s5 + $0xac] sm:$0xf]
    %v1626 = vld [vmem:[%s5 + $0xb0] sm:$0xf]
    %v1627 = vld [vmem:[%s5 + $0xb4] sm:$0xf]
    %v1628 = vld [vmem:[%s5 + $0xb8] sm:$0xf]
    %v1629 = vld [vmem:[%s5 + $0xbc] sm:$0xf]
    %v1630 = vld [vmem:[%s5 + $0xc0] sm:$0xf]
    %v1631 = vld [vmem:[%s5 + $0xc4] sm:$0xf]
    %v1632 = vld [vmem:[%s5 + $0xc8] sm:$0xf]
    %v1633 = vld [vmem:[%s5 + $0xcc] sm:$0xf]
    %v1634 = vld [vmem:[%s5 + $0xd0] sm:$0xf]
    %v1635 = vld [vmem:[%s5 + $0xd4] sm:$0xf]
    %v1636 = vld [vmem:[%s5 + $0xd8] sm:$0xf]
    %v1637 = vld [vmem:[%s5 + $0xdc] sm:$0xf]
    %v1638 = vld [vmem:[%s5 + $0xe0] sm:$0xf]
    %v1639 = vld [vmem:[%s5 + $0xe4] sm:$0xf]
    %v1640 = vld [vmem:[%s5 + $0xe8] sm:$0xf]
    %v1641 = vld [vmem:[%s5 + $0xec] sm:$0xf]
    %v1642 = vld [vmem:[%s5 + $0xf0] sm:$0xf]
    %v1643 = vld [vmem:[%s5 + $0xf4] sm:$0xf]
    %v1644 = vld [vmem:[%s5 + $0xf8] sm:$0xf]
    %v1645 = vld [vmem:[%s5 + $0xfc] sm:$0xf]
    %v1646 = vld [vmem:[%s5 + $0x100] sm:$0xf]
    %v1647 = vld [vmem:[%s5 + $0x104] sm:$0xf]
    %v1648 = vld [vmem:[%s5 + $0x108] sm:$0xf]
    %v1649 = vld [vmem:[%s5 + $0x10c] sm:$0xf]
    %v1650 = vld [vmem:[%s5 + $0x110] sm:$0xf]
    %v1651 = vld [vmem:[%s5 + $0x114] sm:$0xf]
    %v1652 = vld [vmem:[%s5 + $0x118] sm:$0xf]
    %v1653 = vld [vmem:[%s5 + $0x11c] sm:$0xf]
    %v1654 = vld [vmem:[%s5 + $0x120] sm:$0xf]
    %v1655 = vld [vmem:[%s5 + $0x124] sm:$0xf]
    %v1656 = vld [vmem:[%s5 + $0x128] sm:$0xf]
    %v1657 = vld [vmem:[%s5 + $0x12c] sm:$0xf]
    %v1658 = vld [vmem:[%s5 + $0x130] sm:$0xf]
    %v1659 = vld [vmem:[%s5 + $0x134] sm:$0xf]
    %v1660 = vld [vmem:[%s5 + $0x138] sm:$0xf]
    %v1661 = vld [vmem:[%s5 + $0x13c] sm:$0xf]
    %v1662 = vld [vmem:[%s5 + $0x140] sm:$0xf]
    %v1663 = vld [vmem:[%s5 + $0x144] sm:$0xf]
    %v1664 = vld [vmem:[%s5 + $0x148] sm:$0xf]
    %v1665 = vld [vmem:[%s5 + $0x14c] sm:$0xf]
    %v1666 = vld [vmem:[%s5 + $0x150] sm:$0xf]
    %v1667 = vld [vmem:[%s5 + $0x154] sm:$0xf]
    %v1668 = vld [vmem:[%s5 + $0x158] sm:$0xf]
    %v1669 = vld [vmem:[%s5 + $0x15c] sm:$0xf]
    %v1670 = vld [vmem:[%s5 + $0x160] sm:$0xf]
    %v1671 = vld [vmem:[%s5 + $0x164] sm:$0xf]
    %v1672 = vld [vmem:[%s5 + $0x168] sm:$0xf]
    %v1673 = vld [vmem:[%s5 + $0x16c] sm:$0xf]
    %v1674 = vld [vmem:[%s5 + $0x170] sm:$0xf]
    %v1675 = vld [vmem:[%s5 + $0x174] sm:$0xf]
    %v1676 = vld [vmem:[%s5 + $0x178] sm:$0xf]
    %v1677 = vld [vmem:[%s5 + $0x17c] sm:$0xf]
    %v1678 = vld [vmem:[%s5 + $0x180] sm:$0xf]
    %v1679 = vld [vmem:[%s5 + $0x184] sm:$0xf]
    %v1680 = vld [vmem:[%s5 + $0x188] sm:$0xf]
    %v1681 = vld [vmem:[%s5 + $0x18c] sm:$0xf]
    %v1682 = vld [vmem:[%s5 + $0x190] sm:$0xf]
    %v1683 = vld [vmem:[%s5 + $0x194] sm:$0xf]
    %v1684 = vld [vmem:[%s5 + $0x198] sm:$0xf]
    %v1685 = vld [vmem:[%s5 + $0x19c] sm:$0xf]
    %v1686 = vld [vmem:[%s5 + $0x1a0] sm:$0xf]
    %v1687 = vld [vmem:[%s5 + $0x1a4] sm:$0xf]
    %v1688 = vld [vmem:[%s5 + $0x1a8] sm:$0xf]
    %v1689 = vld [vmem:[%s5 + $0x1ac] sm:$0xf]
    %v1690 = vld [vmem:[%s5 + $0x1b0] sm:$0xf]
    %v1691 = vld [vmem:[%s5 + $0x1b4] sm:$0xf]
    %v1692 = vld [vmem:[%s5 + $0x1b8] sm:$0xf]
    %v1693 = vld [vmem:[%s5 + $0x1bc] sm:$0xf]
    %v1694 = vld [vmem:[%s5 + $0x1c0] sm:$0xf]
    %v1695 = vld [vmem:[%s5 + $0x1c4] sm:$0xf]
    %v1696 = vld [vmem:[%s5 + $0x1c8] sm:$0xf]
    %v1697 = vld [vmem:[%s5 + $0x1cc] sm:$0xf]
    %v1698 = vld [vmem:[%s5 + $0x1d0] sm:$0xf]
    %v1699 = vld [vmem:[%s5 + $0x1d4] sm:$0xf]
    %v1700 = vld [vmem:[%s5 + $0x1d8] sm:$0xf]
    %v1701 = vld [vmem:[%s5 + $0x1dc] sm:$0xf]
    %v1702 = vld [vmem:[%s5 + $0x1e0] sm:$0xf]
    %v1703 = vld [vmem:[%s5 + $0x1e4] sm:$0xf]
    %v1704 = vld [vmem:[%s5 + $0x1e8] sm:$0xf]
    %v1705 = vld [vmem:[%s5 + $0x1ec] sm:$0xf]
    %v1706 = vld [vmem:[%s5 + $0x1f0] sm:$0xf]
    %v1707 = vld [vmem:[%s5 + $0x1f4] sm:$0xf]
    %v1708 = vld [vmem:[%s5 + $0x1f8] sm:$0xf]
    %v1709 = vld [vmem:[%s5 + $0x1fc] sm:$0xf]
    %v1710 = vld [vmem:[%s6] sm:$0x1]
    %v1712 = vlaneseq
    %v1713 = vshrl.u32 %v1712, 7
    %v1714 = vsub.s32 0, %v1713
    %v1715 = vrot.slane %v1710, %v1714
    %v1845 = vunpack.c.l.b16 %v1582
    %v1846 = vunpack.c.l.b16 %v1583
    %v1847 = vunpack.c.l.b16 %v1584
    %v1848 = vunpack.c.l.b16 %v1585
    %v1849 = vunpack.c.l.b16 %v1586
    %v1850 = vunpack.c.l.b16 %v1587
    %v1851 = vunpack.c.l.b16 %v1588
    %v1852 = vunpack.c.l.b16 %v1589
    %v1853 = vunpack.c.l.b16 %v1590
    %v1854 = vunpack.c.l.b16 %v1591
    %v1855 = vunpack.c.l.b16 %v1592
    %v1856 = vunpack.c.l.b16 %v1593
    %v1857 = vunpack.c.l.b16 %v1594
    %v1858 = vunpack.c.l.b16 %v1595
    %v1859 = vunpack.c.l.b16 %v1596
    %v1860 = vunpack.c.l.b16 %v1597
    %v1861 = vunpack.c.l.b16 %v1598
    %v1862 = vunpack.c.l.b16 %v1599
    %v1863 = vunpack.c.l.b16 %v1600
    %v1864 = vunpack.c.l.b16 %v1601
    %v1865 = vunpack.c.l.b16 %v1602
    %v1866 = vunpack.c.l.b16 %v1603
    %v1867 = vunpack.c.l.b16 %v1604
    %v1868 = vunpack.c.l.b16 %v1605
    %v1869 = vunpack.c.l.b16 %v1606
    %v1870 = vunpack.c.l.b16 %v1607
    %v1871 = vunpack.c.l.b16 %v1608
    %v1872 = vunpack.c.l.b16 %v1609
    %v1873 = vunpack.c.l.b16 %v1610
    %v1874 = vunpack.c.l.b16 %v1611
    %v1875 = vunpack.c.l.b16 %v1612
    %v1876 = vunpack.c.l.b16 %v1613
    %v1877 = vunpack.c.l.b16 %v1614
    %v1878 = vunpack.c.l.b16 %v1615
    %v1879 = vunpack.c.l.b16 %v1616
    %v1880 = vunpack.c.l.b16 %v1617
    %v1881 = vunpack.c.l.b16 %v1618
    %v1882 = vunpack.c.l.b16 %v1619
    %v1883 = vunpack.c.l.b16 %v1620
    %v1884 = vunpack.c.l.b16 %v1621
    %v1885 = vunpack.c.l.b16 %v1622
    %v1886 = vunpack.c.l.b16 %v1623
    %v1887 = vunpack.c.l.b16 %v1624
    %v1888 = vunpack.c.l.b16 %v1625
    %v1889 = vunpack.c.l.b16 %v1626
    %v1890 = vunpack.c.l.b16 %v1627
    %v1891 = vunpack.c.l.b16 %v1628
    %v1892 = vunpack.c.l.b16 %v1629
    %v1893 = vunpack.c.l.b16 %v1630
    %v1894 = vunpack.c.l.b16 %v1631
    %v1895 = vunpack.c.l.b16 %v1632
    %v1896 = vunpack.c.l.b16 %v1633
    %v1897 = vunpack.c.l.b16 %v1634
    %v1898 = vunpack.c.l.b16 %v1635
    %v1899 = vunpack.c.l.b16 %v1636
    %v1900 = vunpack.c.l.b16 %v1637
    %v1901 = vunpack.c.l.b16 %v1638
    %v1902 = vunpack.c.l.b16 %v1639
    %v1903 = vunpack.c.l.b16 %v1640
    %v1904 = vunpack.c.l.b16 %v1641
    %v1905 = vunpack.c.l.b16 %v1642
    %v1906 = vunpack.c.l.b16 %v1643
    %v1907 = vunpack.c.l.b16 %v1644
    %v1908 = vunpack.c.l.b16 %v1645
    %v1909 = vunpack.c.l.b16 %v1646
    %v1910 = vunpack.c.l.b16 %v1647
    %v1911 = vunpack.c.l.b16 %v1648
    %v1912 = vunpack.c.l.b16 %v1649
    %v1913 = vunpack.c.l.b16 %v1650
    %v1914 = vunpack.c.l.b16 %v1651
    %v1915 = vunpack.c.l.b16 %v1652
    %v1916 = vunpack.c.l.b16 %v1653
    %v1917 = vunpack.c.l.b16 %v1654
    %v1918 = vunpack.c.l.b16 %v1655
    %v1919 = vunpack.c.l.b16 %v1656
    %v1920 = vunpack.c.l.b16 %v1657
    %v1921 = vunpack.c.l.b16 %v1658
    %v1922 = vunpack.c.l.b16 %v1659
    %v1923 = vunpack.c.l.b16 %v1660
    %v1924 = vunpack.c.l.b16 %v1661
    %v1925 = vunpack.c.l.b16 %v1662
    %v1926 = vunpack.c.l.b16 %v1663
    %v1927 = vunpack.c.l.b16 %v1664
    %v1928 = vunpack.c.l.b16 %v1665
    %v1929 = vunpack.c.l.b16 %v1666
    %v1930 = vunpack.c.l.b16 %v1667
    %v1931 = vunpack.c.l.b16 %v1668
    %v1932 = vunpack.c.l.b16 %v1669
    %v1933 = vunpack.c.l.b16 %v1670
    %v1934 = vunpack.c.l.b16 %v1671
    %v1935 = vunpack.c.l.b16 %v1672
    %v1936 = vunpack.c.l.b16 %v1673
    %v1937 = vunpack.c.l.b16 %v1674
    %v1938 = vunpack.c.l.b16 %v1675
    %v1939 = vunpack.c.l.b16 %v1676
    %v1940 = vunpack.c.l.b16 %v1677
    %v1941 = vunpack.c.l.b16 %v1678
    %v1942 = vunpack.c.l.b16 %v1679
    %v1943 = vunpack.c.l.b16 %v1680
    %v1944 = vunpack.c.l.b16 %v1681
    %v1945 = vunpack.c.l.b16 %v1682
    %v1946 = vunpack.c.l.b16 %v1683
    %v1947 = vunpack.c.l.b16 %v1684
    %v1948 = vunpack.c.l.b16 %v1685
    %v1949 = vunpack.c.l.b16 %v1686
    %v1950 = vunpack.c.l.b16 %v1687
    %v1951 = vunpack.c.l.b16 %v1688
    %v1952 = vunpack.c.l.b16 %v1689
    %v1953 = vunpack.c.l.b16 %v1690
    %v1954 = vunpack.c.l.b16 %v1691
    %v1955 = vunpack.c.l.b16 %v1692
    %v1956 = vunpack.c.l.b16 %v1693
    %v1957 = vunpack.c.l.b16 %v1694
    %v1958 = vunpack.c.l.b16 %v1695
    %v1959 = vunpack.c.l.b16 %v1696
    %v1960 = vunpack.c.l.b16 %v1697
    %v1961 = vunpack.c.l.b16 %v1698
    %v1962 = vunpack.c.l.b16 %v1699
    %v1963 = vunpack.c.l.b16 %v1700
    %v1964 = vunpack.c.l.b16 %v1701
    %v1965 = vunpack.c.l.b16 %v1702
    %v1966 = vunpack.c.l.b16 %v1703
    %v1967 = vunpack.c.l.b16 %v1704
    %v1968 = vunpack.c.l.b16 %v1705
    %v1969 = vunpack.c.l.b16 %v1706
    %v1970 = vunpack.c.l.b16 %v1707
    %v1971 = vunpack.c.l.b16 %v1708
    %v1972 = vunpack.c.l.b16 %v1709
    %v1973 = vpack.c.b16 %v1846, %v1845
    %v1974 = vpack.c.b16 %v1848, %v1847
    %v1975 = vpack.c.b16 %v1850, %v1849
    %v1976 = vpack.c.b16 %v1852, %v1851
    %v1977 = vpack.c.b16 %v1854, %v1853
    %v1978 = vpack.c.b16 %v1856, %v1855
    %v1979 = vpack.c.b16 %v1858, %v1857
    %v1980 = vpack.c.b16 %v1860, %v1859
    %v1981 = vpack.c.b16 %v1862, %v1861
    %v1982 = vpack.c.b16 %v1864, %v1863
    %v1983 = vpack.c.b16 %v1866, %v1865
    %v1984 = vpack.c.b16 %v1868, %v1867
    %v1985 = vpack.c.b16 %v1870, %v1869
    %v1986 = vpack.c.b16 %v1872, %v1871
    %v1987 = vpack.c.b16 %v1874, %v1873
    %v1988 = vpack.c.b16 %v1876, %v1875
    %v1989 = vpack.c.b16 %v1878, %v1877
    %v1990 = vpack.c.b16 %v1880, %v1879
    %v1991 = vpack.c.b16 %v1882, %v1881
    %v1992 = vpack.c.b16 %v1884, %v1883
    %v1993 = vpack.c.b16 %v1886, %v1885
    %v1994 = vpack.c.b16 %v1888, %v1887
    %v1995 = vpack.c.b16 %v1890, %v1889
    %v1996 = vpack.c.b16 %v1892, %v1891
    %v1997 = vpack.c.b16 %v1894, %v1893
    %v1998 = vpack.c.b16 %v1896, %v1895
    %v1999 = vpack.c.b16 %v1898, %v1897
    %v2000 = vpack.c.b16 %v1900, %v1899
    %v2001 = vpack.c.b16 %v1902, %v1901
    %v2002 = vpack.c.b16 %v1904, %v1903
    %v2003 = vpack.c.b16 %v1906, %v1905
    %v2004 = vpack.c.b16 %v1908, %v1907
    %v2005 = vpack.c.b16 %v1910, %v1909
    %v2006 = vpack.c.b16 %v1912, %v1911
    %v2007 = vpack.c.b16 %v1914, %v1913
    %v2008 = vpack.c.b16 %v1916, %v1915
    %v2009 = vpack.c.b16 %v1918, %v1917
    %v2010 = vpack.c.b16 %v1920, %v1919
    %v2011 = vpack.c.b16 %v1922, %v1921
    %v2012 = vpack.c.b16 %v1924, %v1923
    %v2013 = vpack.c.b16 %v1926, %v1925
    %v2014 = vpack.c.b16 %v1928, %v1927
    %v2015 = vpack.c.b16 %v1930, %v1929
    %v2016 = vpack.c.b16 %v1932, %v1931
    %v2017 = vpack.c.b16 %v1934, %v1933
    %v2018 = vpack.c.b16 %v1936, %v1935
    %v2019 = vpack.c.b16 %v1938, %v1937
    %v2020 = vpack.c.b16 %v1940, %v1939
    %v2021 = vpack.c.b16 %v1942, %v1941
    %v2022 = vpack.c.b16 %v1944, %v1943
    %v2023 = vpack.c.b16 %v1946, %v1945
    %v2024 = vpack.c.b16 %v1948, %v1947
    %v2025 = vpack.c.b16 %v1950, %v1949
    %v2026 = vpack.c.b16 %v1952, %v1951
    %v2027 = vpack.c.b16 %v1954, %v1953
    %v2028 = vpack.c.b16 %v1956, %v1955
    %v2029 = vpack.c.b16 %v1958, %v1957
    %v2030 = vpack.c.b16 %v1960, %v1959
    %v2031 = vpack.c.b16 %v1962, %v1961
    %v2032 = vpack.c.b16 %v1964, %v1963
    %v2033 = vpack.c.b16 %v1966, %v1965
    %v2034 = vpack.c.b16 %v1968, %v1967
    %v2035 = vpack.c.b16 %v1970, %v1969
    %v2036 = vpack.c.b16 %v1972, %v1971
    %2101 = vmatprep.subr.bf16.mxu0 0
    %2102 = vmatpush1.bf16.msra.mxu0 %v1973
    %2103 = vmatprep.subr.bf16.mxu0 0
    %2104 = vmatpush1.bf16.msra.mxu0 %v1974
    %2105 = vmatprep.subr.bf16.mxu0 0
    %2106 = vmatpush1.bf16.msra.mxu0 %v1975
    %2107 = vmatprep.subr.bf16.mxu0 0
    %2108 = vmatpush1.bf16.msra.mxu0 %v1976
    %2109 = vmatprep.subr.bf16.mxu0 0
    %2110 = vmatpush1.bf16.msra.mxu0 %v1977
    %2111 = vmatprep.subr.bf16.mxu0 0
    %2112 = vmatpush1.bf16.msra.mxu0 %v1978
    %2113 = vmatprep.subr.bf16.mxu0 0
    %2114 = vmatpush1.bf16.msra.mxu0 %v1979
    %2115 = vmatprep.subr.bf16.mxu0 0
    %2116 = vmatpush1.bf16.msra.mxu0 %v1980
    %2117 = vmatprep.subr.bf16.mxu0 0
    %2118 = vmatpush1.bf16.msra.mxu0 %v1981
    %2119 = vmatprep.subr.bf16.mxu0 0
    %2120 = vmatpush1.bf16.msra.mxu0 %v1982
    %2121 = vmatprep.subr.bf16.mxu0 0
    %2122 = vmatpush1.bf16.msra.mxu0 %v1983
    %2123 = vmatprep.subr.bf16.mxu0 0
    %2124 = vmatpush1.bf16.msra.mxu0 %v1984
    %2125 = vmatprep.subr.bf16.mxu0 0
    %2126 = vmatpush1.bf16.msra.mxu0 %v1985
    %2127 = vmatprep.subr.bf16.mxu0 0
    %2128 = vmatpush1.bf16.msra.mxu0 %v1986
    %2129 = vmatprep.subr.bf16.mxu0 0
    %2130 = vmatpush1.bf16.msra.mxu0 %v1987
    %2131 = vmatprep.subr.bf16.mxu0 0
    %2132 = vmatpush1.bf16.msra.mxu0 %v1988
    %2133 = vmatprep.mubr.bf16.mxu0 %v1575
    %2134 = vmatmul.mubr.bf16.gmra.mrb[0].mxu0 %v1574
    %v2135 = vpop.f32.mrb[0].mxu0
    %v2136 = vadd.f32 %v1715, %v2135
    %v2137 = vpop.f32.mrb[0].mxu0
    %v2138 = vpop.f32.mrb[0].mxu0
    %v2139 = vpop.f32.mrb[0].mxu0
    %2140 = vdwg.mxu0
    %2141 = vmatprep.subr.bf16.mxu0 0
    %2142 = vmatpush1.bf16.msra.mxu0 %v1989
    %2143 = vmatprep.subr.bf16.mxu0 0
    %2144 = vmatpush1.bf16.msra.mxu0 %v1990
    %2145 = vmatprep.subr.bf16.mxu0 0
    %2146 = vmatpush1.bf16.msra.mxu0 %v1991
    %2147 = vmatprep.subr.bf16.mxu0 0
    %2148 = vmatpush1.bf16.msra.mxu0 %v1992
    %2149 = vmatprep.subr.bf16.mxu0 0
    %2150 = vmatpush1.bf16.msra.mxu0 %v1993
    %2151 = vmatprep.subr.bf16.mxu0 0
    %2152 = vmatpush1.bf16.msra.mxu0 %v1994
    %2153 = vmatprep.subr.bf16.mxu0 0
    %2154 = vmatpush1.bf16.msra.mxu0 %v1995
    %2155 = vmatprep.subr.bf16.mxu0 0
    %2156 = vmatpush1.bf16.msra.mxu0 %v1996
    %2157 = vmatprep.subr.bf16.mxu0 0
    %2158 = vmatpush1.bf16.msra.mxu0 %v1997
    %2159 = vmatprep.subr.bf16.mxu0 0
    %2160 = vmatpush1.bf16.msra.mxu0 %v1998
    %2161 = vmatprep.subr.bf16.mxu0 0
    %2162 = vmatpush1.bf16.msra.mxu0 %v1999
    %2163 = vmatprep.subr.bf16.mxu0 0
    %2164 = vmatpush1.bf16.msra.mxu0 %v2000
    %2165 = vmatprep.subr.bf16.mxu0 0
    %2166 = vmatpush1.bf16.msra.mxu0 %v2001
    %2167 = vmatprep.subr.bf16.mxu0 0
    %2168 = vmatpush1.bf16.msra.mxu0 %v2002
    %2169 = vmatprep.subr.bf16.mxu0 0
    %2170 = vmatpush1.bf16.msra.mxu0 %v2003
    %2171 = vmatprep.subr.bf16.mxu0 0
    %2172 = vmatpush1.bf16.msra.mxu0 %v2004
    %2173 = vmatprep.mubr.bf16.mxu0 %v1577
    %2174 = vmatmul.mubr.bf16.gmra.mrb[0].mxu0 %v1576
    %v2175 = vpop.f32.mrb[0].mxu0
    %v2176 = vadd.f32 %v2136, %v2175
    %v2177 = vpop.f32.mrb[0].mxu0
    %v2178 = vpop.f32.mrb[0].mxu0
    %v2179 = vpop.f32.mrb[0].mxu0
    %2180 = vdwg.mxu0
    %2181 = vmatprep.subr.bf16.mxu0 0
    %2182 = vmatpush1.bf16.msra.mxu0 %v2005
    %2183 = vmatprep.subr.bf16.mxu0 0
    %2184 = vmatpush1.bf16.msra.mxu0 %v2006
    %2185 = vmatprep.subr.bf16.mxu0 0
    %2186 = vmatpush1.bf16.msra.mxu0 %v2007
    %2187 = vmatprep.subr.bf16.mxu0 0
    %2188 = vmatpush1.bf16.msra.mxu0 %v2008
    %2189 = vmatprep.subr.bf16.mxu0 0
    %2190 = vmatpush1.bf16.msra.mxu0 %v2009
    %2191 = vmatprep.subr.bf16.mxu0 0
    %2192 = vmatpush1.bf16.msra.mxu0 %v2010
    %2193 = vmatprep.subr.bf16.mxu0 0
    %2194 = vmatpush1.bf16.msra.mxu0 %v2011
    %2195 = vmatprep.subr.bf16.mxu0 0
    %2196 = vmatpush1.bf16.msra.mxu0 %v2012
    %2197 = vmatprep.subr.bf16.mxu0 0
    %2198 = vmatpush1.bf16.msra.mxu0 %v2013
    %2199 = vmatprep.subr.bf16.mxu0 0
    %2200 = vmatpush1.bf16.msra.mxu0 %v2014
    %2201 = vmatprep.subr.bf16.mxu0 0
    %2202 = vmatpush1.bf16.msra.mxu0 %v2015
    %2203 = vmatprep.subr.bf16.mxu0 0
    %2204 = vmatpush1.bf16.msra.mxu0 %v2016
    %2205 = vmatprep.subr.bf16.mxu0 0
    %2206 = vmatpush1.bf16.msra.mxu0 %v2017
    %2207 = vmatprep.subr.bf16.mxu0 0
    %2208 = vmatpush1.bf16.msra.mxu0 %v2018
    %2209 = vmatprep.subr.bf16.mxu0 0
    %2210 = vmatpush1.bf16.msra.mxu0 %v2019
    %2211 = vmatprep.subr.bf16.mxu0 0
    %2212 = vmatpush1.bf16.msra.mxu0 %v2020
    %2213 = vmatprep.mubr.bf16.mxu0 %v1579
    %2214 = vmatmul.mubr.bf16.gmra.mrb[0].mxu0 %v1578
    %v2215 = vpop.f32.mrb[0].mxu0
    %v2216 = vadd.f32 %v2176, %v2215
    %v2217 = vpop.f32.mrb[0].mxu0
    %v2218 = vpop.f32.mrb[0].mxu0
    %v2219 = vpop.f32.mrb[0].mxu0
    %2220 = vdwg.mxu0
    %2221 = vmatprep.subr.bf16.mxu0 0
    %2222 = vmatpush1.bf16.msra.mxu0 %v2021
    %2223 = vmatprep.subr.bf16.mxu0 0
    %2224 = vmatpush1.bf16.msra.mxu0 %v2022
    %2225 = vmatprep.subr.bf16.mxu0 0
    %2226 = vmatpush1.bf16.msra.mxu0 %v2023
    %2227 = vmatprep.subr.bf16.mxu0 0
    %2228 = vmatpush1.bf16.msra.mxu0 %v2024
    %2229 = vmatprep.subr.bf16.mxu0 0
    %2230 = vmatpush1.bf16.msra.mxu0 %v2025
    %2231 = vmatprep.subr.bf16.mxu0 0
    %2232 = vmatpush1.bf16.msra.mxu0 %v2026
    %2233 = vmatprep.subr.bf16.mxu0 0
    %2234 = vmatpush1.bf16.msra.mxu0 %v2027
    %2235 = vmatprep.subr.bf16.mxu0 0
    %2236 = vmatpush1.bf16.msra.mxu0 %v2028
    %2237 = vmatprep.subr.bf16.mxu0 0
    %2238 = vmatpush1.bf16.msra.mxu0 %v2029
    %2239 = vmatprep.subr.bf16.mxu0 0
    %2240 = vmatpush1.bf16.msra.mxu0 %v2030
    %2241 = vmatprep.subr.bf16.mxu0 0
    %2242 = vmatpush1.bf16.msra.mxu0 %v2031
    %2243 = vmatprep.subr.bf16.mxu0 0
    %2244 = vmatpush1.bf16.msra.mxu0 %v2032
    %2245 = vmatprep.subr.bf16.mxu0 0
    %2246 = vmatpush1.bf16.msra.mxu0 %v2033
    %2247 = vmatprep.subr.bf16.mxu0 0
    %2248 = vmatpush1.bf16.msra.mxu0 %v2034
    %2249 = vmatprep.subr.bf16.mxu0 0
    %2250 = vmatpush1.bf16.msra.mxu0 %v2035
    %2251 = vmatprep.subr.bf16.mxu0 0
    %2252 = vmatpush1.bf16.msra.mxu0 %v2036
    %2253 = vmatprep.mubr.bf16.mxu0 %v1581
    %2254 = vmatmul.mubr.bf16.gmra.mrb[0].mxu0 %v1580
    %v2255 = vpop.f32.mrb[0].mxu0
    %v2256 = vadd.f32 %v2216, %v2255
    %v2257 = vpop.f32.mrb[0].mxu0
    %v2258 = vpop.f32.mrb[0].mxu0
    %v2259 = vpop.f32.mrb[0].mxu0
    %2260 = vdwg.mxu0
    %v2261 = vmax.f32 %v2256, 0.0
    %v2262 = vpack.c.bf16 %v2261, %v2261
    %v2263 = vld [vmem:[%s7] sm:$0xf]
    %v2264 = vld [vmem:[%s7 + $0x4] sm:$0xf]
    %v2265 = vld [vmem:[%s7 + $0x8] sm:$0xf]
    %v2266 = vld [vmem:[%s7 + $0xc] sm:$0xf]
    %v2267 = vld [vmem:[%s7 + $0x10] sm:$0xf]
    %v2268 = vld [vmem:[%s7 + $0x14] sm:$0xf]
    %v2269 = vld [vmem:[%s7 + $0x18] sm:$0xf]
    %v2270 = vld [vmem:[%s7 + $0x1c] sm:$0xf]
    %v2271 = vld [vmem:[%s8] sm:$0x1]
    %v2273 = vlaneseq
    %v2274 = vshrl.u32 %v2273, 7
    %v2275 = vsub.s32 0, %v2274
    %v2276 = vrot.slane %v2271, %v2275
    %v2286 = vunpack.c.l.b16 %v2263
    %v2287 = vunpack.c.l.b16 %v2264
    %v2288 = vunpack.c.l.b16 %v2265
    %v2289 = vunpack.c.l.b16 %v2266
    %v2290 = vunpack.c.l.b16 %v2267
    %v2291 = vunpack.c.l.b16 %v2268
    %v2292 = vunpack.c.l.b16 %v2269
    %v2293 = vunpack.c.l.b16 %v2270
    %v2294 = vpack.c.b16 %v2287, %v2286
    %v2295 = vpack.c.b16 %v2289, %v2288
    %v2296 = vpack.c.b16 %v2291, %v2290
    %v2297 = vpack.c.b16 %v2293, %v2292
    %vm2302 = vcmask 523264
    %v2304 = vsel %vm2302, %v2262, 0
    %2306 = vmatprep.subr.bf16.mxu0 0
    %2307 = vmatpush1.bf16.msra.mxu0 %v2294
    %2308 = vmatprep.subr.bf16.mxu0 0
    %2309 = vmatpush1.bf16.msra.mxu0 %v2295
    %2310 = vmatprep.subr.bf16.mxu0 0
    %2311 = vmatpush1.bf16.msra.mxu0 %v2296
    %2312 = vmatprep.subr.bf16.mxu0 0
    %2313 = vmatpush1.bf16.msra.mxu0 %v2297
    %2314 = vmatprep.subr.bf16.mxu0 0
    %2315 = vmatpush1.bf16.msra.mxu0 0
    %2316 = vmatprep.subr.bf16.mxu0 0
    %2317 = vmatpush1.bf16.msra.mxu0 0
    %2318 = vmatprep.subr.bf16.mxu0 0
    %2319 = vmatpush1.bf16.msra.mxu0 0
    %2320 = vmatprep.subr.bf16.mxu0 0
    %2321 = vmatpush1.bf16.msra.mxu0 0
    %2322 = vmatprep.subr.bf16.mxu0 0
    %2323 = vmatpush1.bf16.msra.mxu0 0
    %2324 = vmatprep.subr.bf16.mxu0 0
    %2325 = vmatpush1.bf16.msra.mxu0 0
    %2326 = vmatprep.subr.bf16.mxu0 0
    %2327 = vmatpush1.bf16.msra.mxu0 0
    %2328 = vmatprep.subr.bf16.mxu0 0
    %2329 = vmatpush1.bf16.msra.mxu0 0
    %2330 = vmatprep.subr.bf16.mxu0 0
    %2331 = vmatpush1.bf16.msra.mxu0 0
    %2332 = vmatprep.subr.bf16.mxu0 0
    %2333 = vmatpush1.bf16.msra.mxu0 0
    %2334 = vmatprep.subr.bf16.mxu0 0
    %2335 = vmatpush1.bf16.msra.mxu0 0
    %2336 = vmatprep.subr.bf16.mxu0 0
    %2337 = vmatpush1.bf16.msra.mxu0 0
    %2338 = vmatprep.mubr.bf16.mxu0 0
    %2339 = vmatmul.mubr.bf16.gmra.mrb[0].mxu0 %v2304
    %v2340 = vpop.f32.mrb[0].mxu0
    %v2341 = vadd.f32 %v2276, %v2340
    %v2342 = vpop.f32.mrb[0].mxu0
    %v2343 = vpop.f32.mrb[0].mxu0
    %v2344 = vpop.f32.mrb[0].mxu0
    %2345 = vdwg.mxu0
    %v2346 = vmax.f32 %v2341, 0.0
    %v2347 = vpack.c.bf16 %v2346, %v2346
    %v2348 = vld [vmem:[%s9] sm:$0xf]
    %v2349 = vld [vmem:[%s9 + $0x4] sm:$0xf]
    %v2350 = vld [vmem:[%s10] sm:$0x1]
    %v2352 = vlaneseq
    %v2353 = vshrl.u32 %v2352, 7
    %v2354 = vsub.s32 0, %v2353
    %v2355 = vrot.slane %v2350, %v2354
    %v2359 = vunpack.c.l.b16 %v2348
    %v2360 = vunpack.c.l.b16 %v2349
    %v2361 = vpack.c.b16 %v2360, %v2359
    %vm2363 = vcmask 130048
    %v2365 = vsel %vm2363, %v2347, 0
    %2367 = vmatprep.subr.bf16.mxu0 0
    %2368 = vmatpush1.bf16.msra.mxu0 %v2361
    %2369 = vmatprep.subr.bf16.mxu0 0
    %2370 = vmatpush1.bf16.msra.mxu0 0
    %2371 = vmatprep.subr.bf16.mxu0 0
    %2372 = vmatpush1.bf16.msra.mxu0 0
    %2373 = vmatprep.subr.bf16.mxu0 0
    %2374 = vmatpush1.bf16.msra.mxu0 0
    %2375 = vmatprep.subr.bf16.mxu0 0
    %2376 = vmatpush1.bf16.msra.mxu0 0
    %2377 = vmatprep.subr.bf16.mxu0 0
    %2378 = vmatpush1.bf16.msra.mxu0 0
    %2379 = vmatprep.subr.bf16.mxu0 0
    %2380 = vmatpush1.bf16.msra.mxu0 0
    %2381 = vmatprep.subr.bf16.mxu0 0
    %2382 = vmatpush1.bf16.msra.mxu0 0
    %2383 = vmatprep.subr.bf16.mxu0 0
    %2384 = vmatpush1.bf16.msra.mxu0 0
    %2385 = vmatprep.subr.bf16.mxu0 0
    %2386 = vmatpush1.bf16.msra.mxu0 0
    %2387 = vmatprep.subr.bf16.mxu0 0
    %2388 = vmatpush1.bf16.msra.mxu0 0
    %2389 = vmatprep.subr.bf16.mxu0 0
    %2390 = vmatpush1.bf16.msra.mxu0 0
    %2391 = vmatprep.subr.bf16.mxu0 0
    %2392 = vmatpush1.bf16.msra.mxu0 0
    %2393 = vmatprep.subr.bf16.mxu0 0
    %2394 = vmatpush1.bf16.msra.mxu0 0
    %2395 = vmatprep.subr.bf16.mxu0 0
    %2396 = vmatpush1.bf16.msra.mxu0 0
    %2397 = vmatprep.subr.bf16.mxu0 0
    %2398 = vmatpush1.bf16.msra.mxu0 0
    %2399 = vmatprep.mubr.bf16.mxu0 0
    %2400 = vmatmul.mubr.bf16.gmra.mrb[0].mxu0 %v2365
    %v2401 = vpop.f32.mrb[0].mxu0
    %v2402 = vadd.f32 %v2355, %v2401
    %v2403 = vpop.f32.mrb[0].mxu0
    %v2404 = vpop.f32.mrb[0].mxu0
    %v2405 = vpop.f32.mrb[0].mxu0
    %2406 = vdwg.mxu0
    %vm2407 = vcmask 74752
    %v2408 = vsel %vm2407, %v2402, -inf
    %2409 = vmax.xlane.f32.xlu0 %v2408
    %v2410 = vpop.xlane.xlu0 %2409
    %v2411 = vsub.f32 %v2402, %v2410
    %v2412 = vmul.f32 %v2411, 1.442695
    %v2413 = vpow.pop %v2412
    %v2414 = vsel %vm2407, %v2413, 0.0
    %2415 = vadd.xlane.f32.xlu0 %v2414
    %v2416 = vpop.xlane.xlu0 %2415
    %v2417 = vlog2.pop %v2416
    %v2418 = vmul.f32 %v2417, 0.6931472
    %v2419 = vsub.f32 %v2411, %v2418
    %2420 = vst.msk [vmem:[#allocation7] sm:$0x3] %vm2407, %v2419
    // Predicated region
    $region46: #{forward.1} parent=1 // pred_check
      _
    $region47: #{forward.1} parent=1 // pred_check_branch
      %2422 = sbr.rel (0) target = $region49
    $region48: #{forward.1} parent=1 // pred_region
      %s2424 = ssub.s32 32, 32
      %2425 = vsyncadd [#allocation8], %s2424
      %s2427 = sshll.u32 [#allocation7], 4
      %s2428 = int_to_ptr.vmem [resolvable:$true] %s2427
      %2430 = dma.vmem_to_hbm [thread:$0]  %s2428, 32, %s11, [#allocation8]
    $region49: #{forward.1} parent=1 // pred_fallthru
      _
    // Predicated region
    $region50: #{forward.1} parent=1 // pred_check
      _
    $region51: #{forward.1} parent=1 // pred_check_branch
      %2432 = sbr.rel (0) target = $region53
    $region52: #{forward.1} parent=1 // pred_region
      %2433 = dma.done [#allocation8], 32
    $region53: #{forward.1} parent=1 // pred_fallthru
      _
    %2434 = vsyncpa [#allocation8], 1

</llo_original>
